<compile_context>
chip_gen: v6e
topology: v6e:2x2x1
jax: 0.10.0
libtpu: 0.0.40
codegen_flags: <defaults>
</compile_context>

<pallas_src>
import functools

import jax
import jax.numpy as jnp
from jax import lax
from jax.experimental import pallas as pl
from jax.experimental.pallas import tpu as pltpu


# --------------------------------------------------------------------------
# Fused per-graph kernel: 3 GCN layers + attention pooling + MLP head + log_softmax
# --------------------------------------------------------------------------
def gcn_fused_kernel(adj_ref, x_ref,
                     w1_ref, b1_ref, w2_ref, b2_ref, w3_ref, b3_ref,
                     attw_ref, fc1w_ref, fc1b_ref, fc2w_ref, fc2b_ref,
                     out_ref):
    f32 = jnp.float32
    mm_dtype = adj_ref.dtype     # bf16 when the wrapper pre-casts, else f32

    def mm(a, b):
        # MXU matmul with f32 accumulation. The big operands (adj, x, W1..W3)
        # arrive already in mm_dtype (cast once in the wrapper), so astype is a
        # no-op for them; only the f32 intermediates get one down-cast each.
        return jnp.dot(a.astype(mm_dtype), b.astype(mm_dtype),
                       preferred_element_type=f32)

    adj = adj_ref[0]                                                     # [N, N]
    x = x_ref[0]                                                         # [N, F]
    n = adj.shape[0]

    # --- GCN layer 1 (F_in < F_out): aggregate first, then project.
    h1 = jnp.maximum(mm(mm(adj, x), w1_ref[...]) + b1_ref[...], 0.0)     # [N, 64]
    # --- GCN layers 2/3 (shrinking width): project first, then aggregate.
    h2 = jnp.maximum(mm(adj, mm(h1, w2_ref[...])) + b2_ref[...], 0.0)    # [N, 32]
    h3 = jnp.maximum(mm(adj, mm(h2, w3_ref[...])) + b3_ref[...], 0.0)    # [N, 16]

    # --- AttentionModule pooling.
    # mean(h3 @ W, 0) == mean(h3, 0) @ W ; column mean as a (ones/N)-row matmul.
    ones_row = jnp.full((1, n), 1.0 / n, dtype=f32)                      # [1, N]
    mean_h3 = jnp.dot(ones_row, h3, preferred_element_type=f32)          # [1, 16]
    tg = jnp.tanh(jnp.dot(mean_h3, attw_ref[...],
                          preferred_element_type=f32))                   # [1, 16]
    # sigmoid scores as a lane-dense row (NT matmul, same form as q @ k^T).
    scores = jax.nn.sigmoid(
        lax.dot_general(tg, h3, (((1,), (1,)), ((), ())),
                        preferred_element_type=f32))                     # [1, N]
    # representation^T == scores @ h3 (single NN MXU matmul).
    pooled = jnp.dot(scores, h3, preferred_element_type=f32)             # [1, 16]

    # --- MLP head (M=1, tiny; f32, off the critical path).
    h = jnp.maximum(jnp.dot(pooled, fc1w_ref[...], preferred_element_type=f32)
                    + fc1b_ref[...], 0.0)                                # [1, 8]
    logits = (jnp.dot(h, fc2w_ref[...], preferred_element_type=f32)
              + fc2b_ref[...])                                           # [1, C]

    # --- log_softmax over dim=1 (max-stabilized).
    z = logits - jnp.max(logits, axis=1, keepdims=True)
    out_ref[0] = z - jnp.log(jnp.sum(jnp.exp(z), axis=1, keepdims=True))


# --------------------------------------------------------------------------
# Wrapper: one pallas_call, grid over graphs, weights VMEM-resident
# --------------------------------------------------------------------------
def gcn_forward_fused(adj, features, params, *, use_bf16=True):
    batch, n, _ = adj.shape
    f_in = features.shape[-1]
    f1 = params["w1"].shape[1]
    f2 = params["w2"].shape[1]
    f3 = params["w3"].shape[1]
    bn = params["fc1_w"].shape[1]
    c = params["fc2_w"].shape[1]

    op_dtype = jnp.bfloat16 if use_bf16 else jnp.float32
    # Cast big matmul operands ONCE here (halves their HBM->VMEM DMA bytes);
    # biases / attention / head weights stay f32, accumulation is always f32.
    adj_c = adj.astype(op_dtype)
    feats_c = features.astype(op_dtype)
    w1 = params["w1"].astype(op_dtype)
    w2 = params["w2"].astype(op_dtype)
    w3 = params["w3"].astype(op_dtype)

    # Advisory cost estimate (MACs reflect the reordered layers 2/3).
    macs = (n * n * f_in + n * f_in * f1          # layer 1 (adj first)
            + n * f1 * f2 + n * n * f2            # layer 2 (xW first)
            + n * f2 * f3 + n * n * f3            # layer 3 (xW first)
            + n * f3                              # column mean (ones-row matmul)
            + f3 * f3                             # attention transform
            + 2 * n * f3                          # scores + pooled matmuls
            + f3 * bn + bn * c)                   # MLP head
    op_bytes = 2 if use_bf16 else 4
    param_bytes = ((int(w1.size) + int(w2.size) + int(w3.size)) * op_bytes
                   + sum(int(params[k].size) for k in
                         ("b1", "b2", "b3", "att_w",
                          "fc1_w", "fc1_b", "fc2_w", "fc2_b")) * 4)
    cost = pl.CostEstimate(
        flops=2 * batch * macs,
        transcendentals=batch * (2 * n + f3 + 2 * c + 1),
        bytes_accessed=batch * ((n * n + n * f_in) * op_bytes + 4 * c) + param_bytes)

    # Scoped-VMEM budget: double-buffered per-graph operands + resident params
    # + f32 intermediates, with slack; capped at v7x's 64 MiB physical VMEM.
    inter_bytes = 4 * n * (f_in + f1 + f2 + 2 * f3)
    vmem_bytes = (2 * (n * n + n * f_in) * op_bytes
                  + 2 * param_bytes + 2 * inter_bytes)
    vmem_limit = int(min(64 << 20, max(32 << 20, 2 * vmem_bytes)))

    def whole(shape):
        # Whole-array block with a constant index map -> VMEM-resident across
        # grid steps (no per-graph re-DMA of the weights).
        return pl.BlockSpec(shape, lambda b: (0,) * len(shape))

    grid_spec = pltpu.PrefetchScalarGridSpec(
        num_scalar_prefetch=0,
        grid=(batch,),
        in_specs=[
            pl.BlockSpec((1, n, n), lambda b: (b, 0, 0)),      # adj   (per graph)
            pl.BlockSpec((1, n, f_in), lambda b: (b, 0, 0)),   # feats (per graph)
            whole((f_in, f1)), whole((1, f1)),                 # W1, b1 (resident)
            whole((f1, f2)), whole((1, f2)),                   # W2, b2
            whole((f2, f3)), whole((1, f3)),                   # W3, b3
            whole((f3, f3)),                                   # att_w
            whole((f3, bn)), whole((1, bn)),                   # fc1_w, fc1_b
            whole((bn, c)), whole((1, c)),                     # fc2_w, fc2_b
        ],
        out_specs=pl.BlockSpec((1, 1, c), lambda b: (b, 0, 0)),
    )

    out = pl.pallas_call(
        gcn_fused_kernel,
        out_shape=jax.ShapeDtypeStruct((batch, 1, c), jnp.float32),
        grid_spec=grid_spec,
        compiler_params=pltpu.CompilerParams(
            dimension_semantics=("parallel",),   # shard graphs across TCs on v7x
            vmem_limit_bytes=vmem_limit),
        cost_estimate=cost,
    )(adj_c, feats_c,
      w1, params["b1"], w2, params["b2"], w3, params["b3"],
      params["att_w"], params["fc1_w"], params["fc1_b"],
      params["fc2_w"], params["fc2_b"])
    return out.reshape(batch, c)


@functools.partial(jax.jit, static_argnames=("use_bf16",))
def gcn_forward(adj, features, params, use_bf16=True):
    # dropout(p, training=False) -> identity, so it is omitted.
    return gcn_forward_fused(adj, features, params, use_bf16=use_bf16)


# --------------------------------------------------------------------------
# Pure-JAX reference (single graph; vmap'd in __main__ for the batched check)
# --------------------------------------------------------------------------
def gcn_forward_ref(adj, features, params):
    h = jnp.maximum(adj @ features @ params["w1"] + params["b1"], 0.0)
    h = jnp.maximum(adj @ h @ params["w2"] + params["b2"], 0.0)
    h = jnp.maximum(adj @ h @ params["w3"] + params["b3"], 0.0)
    gm = h @ params["att_w"]
    tg = jnp.tanh(jnp.mean(gm, axis=0, keepdims=True))
    sig = jax.nn.sigmoid(jnp.sum(h * tg, axis=1, keepdims=True))
    pooled = jnp.sum(h * sig, axis=0, keepdims=True)
    z = jnp.maximum(pooled @ params["fc1_w"] + params["fc1_b"], 0.0)
    logits = z @ params["fc2_w"] + params["fc2_b"]
    return jax.nn.log_softmax(logits, axis=1)


# --------------------------------------------------------------------------
# Deterministic parameter / input construction
# --------------------------------------------------------------------------
def xavier_uniform(key, fan_in, fan_out):
    bound = jnp.sqrt(6.0 / (fan_in + fan_out))
    return jax.random.uniform(key, (fan_in, fan_out), jnp.float32, -bound, bound)


def make_params(key, feature_dim, num_classes):
    f1, f2, f3, bn = 64, 32, 16, 8
    ks = jax.random.split(key, 8)
    return {
        "w1": xavier_uniform(ks[0], feature_dim, f1), "b1": jnp.zeros((1, f1), jnp.float32),
        "w2": xavier_uniform(ks[1], f1, f2),          "b2": jnp.zeros((1, f2), jnp.float32),
        "w3": xavier_uniform(ks[2], f2, f3),          "b3": jnp.zeros((1, f3), jnp.float32),
        "att_w": xavier_uniform(ks[3], f3, f3),
        "fc1_w": xavier_uniform(ks[4], f3, bn),
        "fc1_b": jax.random.uniform(ks[5], (1, bn), jnp.float32,
                                    -1.0 / jnp.sqrt(f3), 1.0 / jnp.sqrt(f3)),
        "fc2_w": xavier_uniform(ks[6], bn, num_classes),
        "fc2_b": jax.random.uniform(ks[7], (1, num_classes), jnp.float32,
                                    -1.0 / jnp.sqrt(bn), 1.0 / jnp.sqrt(bn)),
    }


def make_normalized_adj(key, n):
    """Random symmetric graph, then D^-1/2 (A + I) D^-1/2."""
    a = (jax.random.uniform(key, (n, n)) < 0.05).astype(jnp.float32)
    a = jnp.maximum(a, a.T)
    a = a + jnp.eye(n, dtype=jnp.float32)
    deg = jnp.sum(a, axis=1)
    d_inv_sqrt = 1.0 / jnp.sqrt(deg)
    return a * d_inv_sqrt[:, None] * d_inv_sqrt[None, :]


if __name__ == "__main__":
    B = 8                   # graphs per batched kernel call
    N = 128                 # nodes per graph
    FEATURE_DIM = 32        # feature_dim_size
    NUM_CLASSES = 4

    key = jax.random.PRNGKey(0)
    k_adj, k_feat, k_par = jax.random.split(key, 3)

    adj_keys = jax.random.split(k_adj, B)
    adj = jax.vmap(lambda k: make_normalized_adj(k, N))(adj_keys)          # [B, N, N]
    features = jax.random.normal(k_feat, (B, N, FEATURE_DIM), jnp.float32)  # [B, N, F]
    params = make_params(k_par, FEATURE_DIM, NUM_CLASSES)

    out_bf16 = jax.block_until_ready(gcn_forward(adj, features, params, use_bf16=True))
    out_f32 = jax.block_until_ready(gcn_forward(adj, features, params, use_bf16=False))
    assert out_bf16.shape == (B, NUM_CLASSES)
    assert bool(jnp.all(jnp.isfinite(out_bf16)))
    assert bool(jnp.all(jnp.isfinite(out_f32)))

    # Batched pure-JAX f32 reference.
    ref = jax.vmap(lambda a, x: gcn_forward_ref(a, x, params))(adj, features)
    ref = jax.block_until_ready(ref.reshape(B, NUM_CLASSES))

    # f32 kernel path: only roundoff from the associativity-preserving reorders.
    assert bool(jnp.allclose(out_f32, ref, rtol=1e-4, atol=1e-4)), \
        float(jnp.max(jnp.abs(out_f32 - ref)))
    # bf16-operand / f32-accumulate path (the default): loose tolerance.
    assert bool(jnp.allclose(out_bf16, ref, rtol=5e-2, atol=5e-2)), \
        float(jnp.max(jnp.abs(out_bf16 - ref)))

    print("KERNEL_OK")
</pallas_src>

<mosaic_0001>
module attributes {stable_mosaic.version = 11 : i64} {
  func.func @gcn_fused_kernel(%arg0: i32, %arg1: memref<1x128x128xbf16, #tpu.memory_space<vmem>>, %arg2: memref<1x128x32xbf16, #tpu.memory_space<vmem>>, %arg3: memref<32x64xbf16, #tpu.memory_space<vmem>>, %arg4: memref<1x64xf32, #tpu.memory_space<vmem>>, %arg5: memref<64x32xbf16, #tpu.memory_space<vmem>>, %arg6: memref<1x32xf32, #tpu.memory_space<vmem>>, %arg7: memref<32x16xbf16, #tpu.memory_space<vmem>>, %arg8: memref<1x16xf32, #tpu.memory_space<vmem>>, %arg9: memref<16x16xf32, #tpu.memory_space<vmem>>, %arg10: memref<16x8xf32, #tpu.memory_space<vmem>>, %arg11: memref<1x8xf32, #tpu.memory_space<vmem>>, %arg12: memref<8x4xf32, #tpu.memory_space<vmem>>, %arg13: memref<1x4xf32, #tpu.memory_space<vmem>>, %arg14: memref<1x1x4xf32, #tpu.memory_space<vmem>>) attributes {dimension_semantics = [#tpu.dimension_semantics<parallel>], iteration_bounds = array<i64: 8>, scalar_prefetch = 0 : i64, scratch_operands = 0 : i64, tpu.core_type = #tpu.core_type<tc>, window_params = [{transform_indices = @transform_0, window_bounds = array<i64: 1, 128, 128>}, {transform_indices = @transform_1, window_bounds = array<i64: 1, 128, 32>}, {pipeline_mode = #tpu.pipeline_mode<synchronous>, transform_indices = @transform_2, window_bounds = array<i64: 32, 64>}, {pipeline_mode = #tpu.pipeline_mode<synchronous>, transform_indices = @transform_3, window_bounds = array<i64: 1, 64>}, {pipeline_mode = #tpu.pipeline_mode<synchronous>, transform_indices = @transform_4, window_bounds = array<i64: 64, 32>}, {pipeline_mode = #tpu.pipeline_mode<synchronous>, transform_indices = @transform_5, window_bounds = array<i64: 1, 32>}, {pipeline_mode = #tpu.pipeline_mode<synchronous>, transform_indices = @transform_6, window_bounds = array<i64: 32, 16>}, {pipeline_mode = #tpu.pipeline_mode<synchronous>, transform_indices = @transform_7, window_bounds = array<i64: 1, 16>}, {pipeline_mode = #tpu.pipeline_mode<synchronous>, transform_indices = @transform_8, window_bounds = array<i64: 16, 16>}, {pipeline_mode = #tpu.pipeline_mode<synchronous>, transform_indices = @transform_9, window_bounds = array<i64: 16, 8>}, {pipeline_mode = #tpu.pipeline_mode<synchronous>, transform_indices = @transform_10, window_bounds = array<i64: 1, 8>}, {pipeline_mode = #tpu.pipeline_mode<synchronous>, transform_indices = @transform_11, window_bounds = array<i64: 8, 4>}, {pipeline_mode = #tpu.pipeline_mode<synchronous>, transform_indices = @transform_12, window_bounds = array<i64: 1, 4>}, {transform_indices = @transform_13, window_bounds = array<i64: 1, 1, 4>}]} {
    %c0 = arith.constant 0 : index
    %c0_0 = arith.constant 0 : index
    %c0_1 = arith.constant 0 : index
    %0 = vector.load %arg1[%c0, %c0_0, %c0_1] : memref<1x128x128xbf16, #tpu.memory_space<vmem>>, vector<1x128x128xbf16>
    %1 = vector.shape_cast %0 : vector<1x128x128xbf16> to vector<128x128xbf16>
    %c0_2 = arith.constant 0 : index
    %c0_3 = arith.constant 0 : index
    %c0_4 = arith.constant 0 : index
    %2 = vector.load %arg2[%c0_2, %c0_3, %c0_4] : memref<1x128x32xbf16, #tpu.memory_space<vmem>>, vector<1x128x32xbf16>
    %3 = vector.shape_cast %2 : vector<1x128x32xbf16> to vector<128x32xbf16>
    %cst = arith.constant dense<0.000000e+00> : vector<128x32xf32>
    %4 = tpu.matmul %1, %3, %cst {dimension_numbers = #tpu.dot_dimension_numbers<[1], [0], [0], [1], [0, 0, 1, 1], [], []>} : vector<128x128xbf16>, vector<128x32xbf16>, vector<128x32xf32> -> vector<128x32xf32>
    %c0_5 = arith.constant 0 : index
    %c0_6 = arith.constant 0 : index
    %5 = vector.load %arg3[%c0_5, %c0_6] : memref<32x64xbf16, #tpu.memory_space<vmem>>, vector<32x64xbf16>
    %6 = arith.truncf %4 : vector<128x32xf32> to vector<128x32xbf16>
    %cst_7 = arith.constant dense<0.000000e+00> : vector<128x64xf32>
    %7 = tpu.matmul %6, %5, %cst_7 {dimension_numbers = #tpu.dot_dimension_numbers<[1], [0], [0], [1], [0, 0, 1, 1], [], []>} : vector<128x32xbf16>, vector<32x64xbf16>, vector<128x64xf32> -> vector<128x64xf32>
    %c0_8 = arith.constant 0 : index
    %c0_9 = arith.constant 0 : index
    %8 = vector.load %arg4[%c0_8, %c0_9] : memref<1x64xf32, #tpu.memory_space<vmem>>, vector<1x64xf32>
    %9 = vector.broadcast %8 : vector<1x64xf32> to vector<128x64xf32>
    %10 = arith.addf %7, %9 : vector<128x64xf32>
    %cst_10 = arith.constant 0.000000e+00 : f32
    %11 = vector.broadcast %cst_10 : f32 to vector<128x64xf32>
    %12 = arith.maximumf %10, %11 : vector<128x64xf32>
    %c0_11 = arith.constant 0 : index
    %c0_12 = arith.constant 0 : index
    %13 = vector.load %arg5[%c0_11, %c0_12] : memref<64x32xbf16, #tpu.memory_space<vmem>>, vector<64x32xbf16>
    %14 = arith.truncf %12 : vector<128x64xf32> to vector<128x64xbf16>
    %cst_13 = arith.constant dense<0.000000e+00> : vector<128x32xf32>
    %15 = tpu.matmul %14, %13, %cst_13 {dimension_numbers = #tpu.dot_dimension_numbers<[1], [0], [0], [1], [0, 0, 1, 1], [], []>} : vector<128x64xbf16>, vector<64x32xbf16>, vector<128x32xf32> -> vector<128x32xf32>
    %16 = arith.truncf %15 : vector<128x32xf32> to vector<128x32xbf16>
    %cst_14 = arith.constant dense<0.000000e+00> : vector<128x32xf32>
    %17 = tpu.matmul %1, %16, %cst_14 {dimension_numbers = #tpu.dot_dimension_numbers<[1], [0], [0], [1], [0, 0, 1, 1], [], []>} : vector<128x128xbf16>, vector<128x32xbf16>, vector<128x32xf32> -> vector<128x32xf32>
    %c0_15 = arith.constant 0 : index
    %c0_16 = arith.constant 0 : index
    %18 = vector.load %arg6[%c0_15, %c0_16] : memref<1x32xf32, #tpu.memory_space<vmem>>, vector<1x32xf32>
    %19 = vector.broadcast %18 : vector<1x32xf32> to vector<128x32xf32>
    %20 = arith.addf %17, %19 : vector<128x32xf32>
    %cst_17 = arith.constant 0.000000e+00 : f32
    %21 = vector.broadcast %cst_17 : f32 to vector<128x32xf32>
    %22 = arith.maximumf %20, %21 : vector<128x32xf32>
    %c0_18 = arith.constant 0 : index
    %c0_19 = arith.constant 0 : index
    %23 = vector.load %arg7[%c0_18, %c0_19] : memref<32x16xbf16, #tpu.memory_space<vmem>>, vector<32x16xbf16>
    %24 = arith.truncf %22 : vector<128x32xf32> to vector<128x32xbf16>
    %cst_20 = arith.constant dense<0.000000e+00> : vector<128x16xf32>
    %25 = tpu.matmul %24, %23, %cst_20 {dimension_numbers = #tpu.dot_dimension_numbers<[1], [0], [0], [1], [0, 0, 1, 1], [], []>} : vector<128x32xbf16>, vector<32x16xbf16>, vector<128x16xf32> -> vector<128x16xf32>
    %26 = arith.truncf %25 : vector<128x16xf32> to vector<128x16xbf16>
    %cst_21 = arith.constant dense<0.000000e+00> : vector<128x16xf32>
    %27 = tpu.matmul %1, %26, %cst_21 {dimension_numbers = #tpu.dot_dimension_numbers<[1], [0], [0], [1], [0, 0, 1, 1], [], []>} : vector<128x128xbf16>, vector<128x16xbf16>, vector<128x16xf32> -> vector<128x16xf32>
    %c0_22 = arith.constant 0 : index
    %c0_23 = arith.constant 0 : index
    %28 = vector.load %arg8[%c0_22, %c0_23] : memref<1x16xf32, #tpu.memory_space<vmem>>, vector<1x16xf32>
    %29 = vector.broadcast %28 : vector<1x16xf32> to vector<128x16xf32>
    %30 = arith.addf %27, %29 : vector<128x16xf32>
    %cst_24 = arith.constant 0.000000e+00 : f32
    %31 = vector.broadcast %cst_24 : f32 to vector<128x16xf32>
    %32 = arith.maximumf %30, %31 : vector<128x16xf32>
    %cst_25 = arith.constant 7.812500e-03 : f32
    %33 = vector.broadcast %cst_25 : f32 to vector<1x128xf32>
    %cst_26 = arith.constant dense<0.000000e+00> : vector<1x16xf32>
    %34 = tpu.matmul %33, %32, %cst_26 {dimension_numbers = #tpu.dot_dimension_numbers<[1], [0], [0], [1], [0, 0, 1, 1], [], []>} : vector<1x128xf32>, vector<128x16xf32>, vector<1x16xf32> -> vector<1x16xf32>
    %c0_27 = arith.constant 0 : index
    %c0_28 = arith.constant 0 : index
    %35 = vector.load %arg9[%c0_27, %c0_28] : memref<16x16xf32, #tpu.memory_space<vmem>>, vector<16x16xf32>
    %cst_29 = arith.constant dense<0.000000e+00> : vector<1x16xf32>
    %36 = tpu.matmul %34, %35, %cst_29 {dimension_numbers = #tpu.dot_dimension_numbers<[1], [0], [0], [1], [0, 0, 1, 1], [], []>} : vector<1x16xf32>, vector<16x16xf32>, vector<1x16xf32> -> vector<1x16xf32>
    %37 = math.tanh %36 : vector<1x16xf32>
    %cst_30 = arith.constant dense<0.000000e+00> : vector<1x128xf32>
    %38 = tpu.matmul %37, %32, %cst_30 {dimension_numbers = #tpu.dot_dimension_numbers<[1], [1], [0], [0], [0, 0, 1, 0], [], []>} : vector<1x16xf32>, vector<128x16xf32>, vector<1x128xf32> -> vector<1x128xf32>
    %39 = arith.negf %38 : vector<1x128xf32>
    %40 = math.exp %39 : vector<1x128xf32>
    %cst_31 = arith.constant 1.000000e+00 : f32
    %41 = vector.broadcast %cst_31 : f32 to vector<1x128xf32>
    %42 = arith.addf %41, %40 : vector<1x128xf32>
    %43 = arith.divf %41, %42 : vector<1x128xf32>
    %cst_32 = arith.constant dense<0.000000e+00> : vector<1x16xf32>
    %44 = tpu.matmul %43, %32, %cst_32 {dimension_numbers = #tpu.dot_dimension_numbers<[1], [0], [0], [1], [0, 0, 1, 1], [], []>} : vector<1x128xf32>, vector<128x16xf32>, vector<1x16xf32> -> vector<1x16xf32>
    %c0_33 = arith.constant 0 : index
    %c0_34 = arith.constant 0 : index
    %45 = vector.load %arg10[%c0_33, %c0_34] : memref<16x8xf32, #tpu.memory_space<vmem>>, vector<16x8xf32>
    %cst_35 = arith.constant dense<0.000000e+00> : vector<1x8xf32>
    %46 = tpu.matmul %44, %45, %cst_35 {dimension_numbers = #tpu.dot_dimension_numbers<[1], [0], [0], [1], [0, 0, 1, 1], [], []>} : vector<1x16xf32>, vector<16x8xf32>, vector<1x8xf32> -> vector<1x8xf32>
    %c0_36 = arith.constant 0 : index
    %c0_37 = arith.constant 0 : index
    %47 = vector.load %arg11[%c0_36, %c0_37] : memref<1x8xf32, #tpu.memory_space<vmem>>, vector<1x8xf32>
    %48 = arith.addf %46, %47 : vector<1x8xf32>
    %cst_38 = arith.constant 0.000000e+00 : f32
    %49 = vector.broadcast %cst_38 : f32 to vector<1x8xf32>
    %50 = arith.maximumf %48, %49 : vector<1x8xf32>
    %c0_39 = arith.constant 0 : index
    %c0_40 = arith.constant 0 : index
    %51 = vector.load %arg12[%c0_39, %c0_40] : memref<8x4xf32, #tpu.memory_space<vmem>>, vector<8x4xf32>
    %cst_41 = arith.constant dense<0.000000e+00> : vector<1x4xf32>
    %52 = tpu.matmul %50, %51, %cst_41 {dimension_numbers = #tpu.dot_dimension_numbers<[1], [0], [0], [1], [0, 0, 1, 1], [], []>} : vector<1x8xf32>, vector<8x4xf32>, vector<1x4xf32> -> vector<1x4xf32>
    %c0_42 = arith.constant 0 : index
    %c0_43 = arith.constant 0 : index
    %53 = vector.load %arg13[%c0_42, %c0_43] : memref<1x4xf32, #tpu.memory_space<vmem>>, vector<1x4xf32>
    %54 = arith.addf %52, %53 : vector<1x4xf32>
    %cst_44 = arith.constant dense<0xFF800000> : vector<1xf32>
    %55 = vector.multi_reduction <maximumf>, %54, %cst_44 [1] : vector<1x4xf32> to vector<1xf32>
    %56 = vector.shape_cast %55 : vector<1xf32> to vector<1x1xf32>
    %57 = vector.broadcast %56 : vector<1x1xf32> to vector<1x4xf32>
    %58 = arith.subf %54, %57 : vector<1x4xf32>
    %59 = math.exp %58 : vector<1x4xf32>
    %cst_45 = arith.constant dense<0.000000e+00> : vector<1xf32>
    %60 = vector.multi_reduction <add>, %59, %cst_45 [1] : vector<1x4xf32> to vector<1xf32>
    %61 = vector.shape_cast %60 : vector<1xf32> to vector<1x1xf32>
    %62 = math.log %61 : vector<1x1xf32>
    %63 = vector.broadcast %62 : vector<1x1xf32> to vector<1x4xf32>
    %64 = arith.subf %58, %63 : vector<1x4xf32>
    %c0_46 = arith.constant 0 : index
    %c0_47 = arith.constant 0 : index
    %c0_48 = arith.constant 0 : index
    %65 = vector.load %arg14[%c0_46, %c0_47, %c0_48] : memref<1x1x4xf32, #tpu.memory_space<vmem>>, vector<1x1x4xf32>
    %66 = vector.shape_cast %65 : vector<1x1x4xf32> to vector<1x4xf32>
    %67 = vector.shape_cast %64 : vector<1x4xf32> to vector<1x1x4xf32>
    tpu.vector_store %arg14[%c0_46, %c0_47, %c0_48], %67 {strides = array<i32>} : memref<1x1x4xf32, #tpu.memory_space<vmem>>, vector<1x1x4xf32>,
    return
  }
  func.func @transform_0(%arg0: i32) -> (i32, i32, i32) {
    %c0_i32 = arith.constant 0 : i32
    %c0_i32_0 = arith.constant 0 : i32
    %c0_i32_1 = arith.constant 0 : i32
    return %arg0, %c0_i32, %c0_i32_0 : i32, i32, i32
  }
  func.func @transform_1(%arg0: i32) -> (i32, i32, i32) {
    %c0_i32 = arith.constant 0 : i32
    %c0_i32_0 = arith.constant 0 : i32
    %c0_i32_1 = arith.constant 0 : i32
    return %arg0, %c0_i32, %c0_i32_0 : i32, i32, i32
  }
  func.func @transform_2(%arg0: i32) -> (i32, i32) {
    %c0_i32 = arith.constant 0 : i32
    %c0_i32_0 = arith.constant 0 : i32
    %c0_i32_1 = arith.constant 0 : i32
    return %c0_i32, %c0_i32_0 : i32, i32
  }
  func.func @transform_3(%arg0: i32) -> (i32, i32) {
    %c0_i32 = arith.constant 0 : i32
    %c0_i32_0 = arith.constant 0 : i32
    %c0_i32_1 = arith.constant 0 : i32
    return %c0_i32, %c0_i32_0 : i32, i32
  }
  func.func @transform_4(%arg0: i32) -> (i32, i32) {
    %c0_i32 = arith.constant 0 : i32
    %c0_i32_0 = arith.constant 0 : i32
    %c0_i32_1 = arith.constant 0 : i32
    return %c0_i32, %c0_i32_0 : i32, i32
  }
  func.func @transform_5(%arg0: i32) -> (i32, i32) {
    %c0_i32 = arith.constant 0 : i32
    %c0_i32_0 = arith.constant 0 : i32
    %c0_i32_1 = arith.constant 0 : i32
    return %c0_i32, %c0_i32_0 : i32, i32
  }
  func.func @transform_6(%arg0: i32) -> (i32, i32) {
    %c0_i32 = arith.constant 0 : i32
    %c0_i32_0 = arith.constant 0 : i32
    %c0_i32_1 = arith.constant 0 : i32
    return %c0_i32, %c0_i32_0 : i32, i32
  }
  func.func @transform_7(%arg0: i32) -> (i32, i32) {
    %c0_i32 = arith.constant 0 : i32
    %c0_i32_0 = arith.constant 0 : i32
    %c0_i32_1 = arith.constant 0 : i32
    return %c0_i32, %c0_i32_0 : i32, i32
  }
  func.func @transform_8(%arg0: i32) -> (i32, i32) {
    %c0_i32 = arith.constant 0 : i32
    %c0_i32_0 = arith.constant 0 : i32
    %c0_i32_1 = arith.constant 0 : i32
    return %c0_i32, %c0_i32_0 : i32, i32
  }
  func.func @transform_9(%arg0: i32) -> (i32, i32) {
    %c0_i32 = arith.constant 0 : i32
    %c0_i32_0 = arith.constant 0 : i32
    %c0_i32_1 = arith.constant 0 : i32
    return %c0_i32, %c0_i32_0 : i32, i32
  }
  func.func @transform_10(%arg0: i32) -> (i32, i32) {
    %c0_i32 = arith.constant 0 : i32
    %c0_i32_0 = arith.constant 0 : i32
    %c0_i32_1 = arith.constant 0 : i32
    return %c0_i32, %c0_i32_0 : i32, i32
  }
  func.func @transform_11(%arg0: i32) -> (i32, i32) {
    %c0_i32 = arith.constant 0 : i32
    %c0_i32_0 = arith.constant 0 : i32
    %c0_i32_1 = arith.constant 0 : i32
    return %c0_i32, %c0_i32_0 : i32, i32
  }
  func.func @transform_12(%arg0: i32) -> (i32, i32) {
    %c0_i32 = arith.constant 0 : i32
    %c0_i32_0 = arith.constant 0 : i32
    %c0_i32_1 = arith.constant 0 : i32
    return %c0_i32, %c0_i32_0 : i32, i32
  }
  func.func @transform_13(%arg0: i32) -> (i32, i32, i32) {
    %c0_i32 = arith.constant 0 : i32
    %c0_i32_0 = arith.constant 0 : i32
    %c0_i32_1 = arith.constant 0 : i32
    return %arg0, %c0_i32, %c0_i32_0 : i32, i32, i32
  }
}

</mosaic_0001>

<llo_original>
// kernel: gcn_forward.1
$region0: #{gcn_forward.1}
  #allocation0 [shape = 'u32[]', space=smem, size = 0x4, offset = 0x4, fixed_abs, tag = 'smem constant byte address 0x4 - core index']
  #allocation1 [shape = 'u32[144,128]{1,0:T(1,128)}', space=vmem, size = 0x12000, scoped, tag = 'internal scratch']
  %s0 = inlined_call_operand.vmem [shape: bf16[8,128,128], index: 0, kind: input, shape index: {}]
  %s1 = inlined_call_operand.vmem [shape: bf16[8,128,32], index: 1, kind: input, shape index: {}]
  %s2 = inlined_call_operand.vmem [shape: bf16[32,64], index: 2, kind: input, shape index: {}]
  %s3 = inlined_call_operand.vmem [shape: f32[1,64], index: 3, kind: input, shape index: {}]
  %s4 = inlined_call_operand.vmem [shape: bf16[64,32], index: 4, kind: input, shape index: {}]
  %s5 = inlined_call_operand.vmem [shape: f32[1,32], index: 5, kind: input, shape index: {}]
  %s6 = inlined_call_operand.vmem [shape: bf16[32,16], index: 6, kind: input, shape index: {}]
  %s7 = inlined_call_operand.vmem [shape: f32[1,16], index: 7, kind: input, shape index: {}]
  %s8 = inlined_call_operand.vmem [shape: f32[16,16], index: 8, kind: input, shape index: {}]
  %s9 = inlined_call_operand.vmem [shape: f32[16,8], index: 9, kind: input, shape index: {}]
  %s10 = inlined_call_operand.vmem [shape: f32[1,8], index: 10, kind: input, shape index: {}]
  %s11 = inlined_call_operand.vmem [shape: f32[8,4], index: 11, kind: input, shape index: {}]
  %s12 = inlined_call_operand.vmem [shape: f32[1,4], index: 12, kind: input, shape index: {}]
  %s13 = inlined_call_operand.vmem [shape: f32[8,1,4], index: 13, kind: output, shape index: {}]
  %s14 = sld [smem:[#allocation0]]
  $region85: #{gcn_forward.1} parent=0
    _
  %s16 = ssub.s32 1, %s14
  %s17 = scalar_select 0, %s16, %s14
  loop: start=0, step=1, limit=10
  $region2: #{gcn_forward.1} parent=0 // loop_pre_header
    _
  $region3: #{gcn_forward.1} parent=0 // loop_header
    %s19 = sphi 0, %s23
    %p20 = scmp.ge.s32.totalorder %s19, 10
    %s29 = sphi 0, %s31
    %s32 = sphi 0, %s29
    %s33 = sphi 0, %s32
    %s49 = sphi 0, %s33
    %s55 = sphi 0, %s57
    %s58 = sphi 0, %s55
    %s59 = sphi 0, %s58
    %s75 = sphi 0, %s59
    %s79 = sphi 0, %s79
    %s81 = sphi 0, %s79
    %s82 = sphi 0, %s81
    %s96 = sphi 0, %s82
    %s100 = sphi 0, %s100
    %s102 = sphi 0, %s100
    %s103 = sphi 0, %s102
    %s117 = sphi 0, %s103
    %s121 = sphi 0, %s121
    %s123 = sphi 0, %s121
    %s124 = sphi 0, %s123
    %s138 = sphi 0, %s124
    %s142 = sphi 0, %s142
    %s144 = sphi 0, %s142
    %s145 = sphi 0, %s144
    %s159 = sphi 0, %s145
    %s163 = sphi 0, %s163
    %s165 = sphi 0, %s163
    %s166 = sphi 0, %s165
    %s180 = sphi 0, %s166
    %s184 = sphi 0, %s184
    %s186 = sphi 0, %s184
    %s187 = sphi 0, %s186
    %s201 = sphi 0, %s187
    %s205 = sphi 0, %s205
    %s207 = sphi 0, %s205
    %s208 = sphi 0, %s207
    %s222 = sphi 0, %s208
    %s226 = sphi 0, %s226
    %s228 = sphi 0, %s226
    %s229 = sphi 0, %s228
    %s243 = sphi 0, %s229
    %s247 = sphi 0, %s247
    %s249 = sphi 0, %s247
    %s250 = sphi 0, %s249
    %s264 = sphi 0, %s250
    %s268 = sphi 0, %s268
    %s270 = sphi 0, %s268
    %s271 = sphi 0, %s270
    %s285 = sphi 0, %s271
    %s289 = sphi 0, %s289
    %s291 = sphi 0, %s289
    %s292 = sphi 0, %s291
    %s306 = sphi 0, %s292
    %s312 = sphi 0, %s314
    %s315 = sphi 0, %s312
    %s316 = sphi 0, %s315
    %s332 = sphi 0, %s316
  $region4: #{gcn_forward.1} parent=0 // loop_header_branch
    %22 = sbr.rel (%p20) target = $region8
  $region5: #{gcn_forward.1} parent=0 // loop_body
    %s24 = ssub.s32 %s19, 1
    %s25 = ssub.s32 %s19, 2
    %s26 = sadd.s32 %s19, 1
    %s27 = ssub.s32 %s19, %s26
    %p28 = scmp.eq.s32.totalorder %s27, 0
    %s30 = sadd.s32 %s29, 1
    %s31 = scalar_select %p28, %s29, %s30
    %p34 = pneg %p28
    %p35 = scmp.eq.s32.totalorder %s19, 7
    %p36 = por %p34, %p35
    %p37 = scmp.ne.s32.totalorder %s29, %s32
    %p38 = scmp.eq.s32.totalorder %s19, 0
    %p39 = por %p37, %p38
    %p40 = scmp.ne.s32.totalorder %s29, %s32
    %p41 = scmp.eq.s32.totalorder %s24, 7
    %p42 = por %p40, %p41
    %p43 = scmp.ne.s32.totalorder %s32, %s33
    %p44 = scmp.eq.s32.totalorder %s24, 0
    %p45 = por %p43, %p44
    %p46 = scmp.ne.s32.totalorder %s32, %s33
    %p47 = scmp.eq.s32.totalorder %s25, 7
    %p48 = por %p46, %p47
    %p50 = scmp.ne.s32.totalorder %s33, %s49
    %p51 = scmp.eq.s32.totalorder %s25, 0
    %p52 = por %p50, %p51
    %s53 = ssub.s32 %s19, %s26
    %p54 = scmp.eq.s32.totalorder %s53, 0
    %s56 = sadd.s32 %s55, 1
    %s57 = scalar_select %p54, %s55, %s56
    %p60 = pneg %p54
    %p61 = scmp.eq.s32.totalorder %s19, 7
    %p62 = por %p60, %p61
    %p63 = scmp.ne.s32.totalorder %s55, %s58
    %p64 = scmp.eq.s32.totalorder %s19, 0
    %p65 = por %p63, %p64
    %p66 = scmp.ne.s32.totalorder %s55, %s58
    %p67 = scmp.eq.s32.totalorder %s24, 7
    %p68 = por %p66, %p67
    %p69 = scmp.ne.s32.totalorder %s58, %s59
    %p70 = scmp.eq.s32.totalorder %s24, 0
    %p71 = por %p69, %p70
    %p72 = scmp.ne.s32.totalorder %s58, %s59
    %p73 = scmp.eq.s32.totalorder %s25, 7
    %p74 = por %p72, %p73
    %p76 = scmp.ne.s32.totalorder %s59, %s75
    %p77 = scmp.eq.s32.totalorder %s25, 0
    %p78 = por %p76, %p77
    %s80 = sadd.s32 %s79, 1
    %p83 = scmp.eq.s32.totalorder %s19, 7
    %p84 = scmp.ne.s32.totalorder %s79, %s81
    %p85 = scmp.eq.s32.totalorder %s19, 0
    %p86 = por %p84, %p85
    %p87 = scmp.ne.s32.totalorder %s79, %s81
    %p88 = scmp.eq.s32.totalorder %s24, 7
    %p89 = por %p87, %p88
    %p90 = scmp.ne.s32.totalorder %s81, %s82
    %p91 = scmp.eq.s32.totalorder %s24, 0
    %p92 = por %p90, %p91
    %p93 = scmp.ne.s32.totalorder %s81, %s82
    %p94 = scmp.eq.s32.totalorder %s25, 7
    %p95 = por %p93, %p94
    %p97 = scmp.ne.s32.totalorder %s82, %s96
    %p98 = scmp.eq.s32.totalorder %s25, 0
    %p99 = por %p97, %p98
    %s101 = sadd.s32 %s100, 1
    %p104 = scmp.eq.s32.totalorder %s19, 7
    %p105 = scmp.ne.s32.totalorder %s100, %s102
    %p106 = scmp.eq.s32.totalorder %s19, 0
    %p107 = por %p105, %p106
    %p108 = scmp.ne.s32.totalorder %s100, %s102
    %p109 = scmp.eq.s32.totalorder %s24, 7
    %p110 = por %p108, %p109
    %p111 = scmp.ne.s32.totalorder %s102, %s103
    %p112 = scmp.eq.s32.totalorder %s24, 0
    %p113 = por %p111, %p112
    %p114 = scmp.ne.s32.totalorder %s102, %s103
    %p115 = scmp.eq.s32.totalorder %s25, 7
    %p116 = por %p114, %p115
    %p118 = scmp.ne.s32.totalorder %s103, %s117
    %p119 = scmp.eq.s32.totalorder %s25, 0
    %p120 = por %p118, %p119
    %s122 = sadd.s32 %s121, 1
    %p125 = scmp.eq.s32.totalorder %s19, 7
    %p126 = scmp.ne.s32.totalorder %s121, %s123
    %p127 = scmp.eq.s32.totalorder %s19, 0
    %p128 = por %p126, %p127
    %p129 = scmp.ne.s32.totalorder %s121, %s123
    %p130 = scmp.eq.s32.totalorder %s24, 7
    %p131 = por %p129, %p130
    %p132 = scmp.ne.s32.totalorder %s123, %s124
    %p133 = scmp.eq.s32.totalorder %s24, 0
    %p134 = por %p132, %p133
    %p135 = scmp.ne.s32.totalorder %s123, %s124
    %p136 = scmp.eq.s32.totalorder %s25, 7
    %p137 = por %p135, %p136
    %p139 = scmp.ne.s32.totalorder %s124, %s138
    %p140 = scmp.eq.s32.totalorder %s25, 0
    %p141 = por %p139, %p140
    %s143 = sadd.s32 %s142, 1
    %p146 = scmp.eq.s32.totalorder %s19, 7
    %p147 = scmp.ne.s32.totalorder %s142, %s144
    %p148 = scmp.eq.s32.totalorder %s19, 0
    %p149 = por %p147, %p148
    %p150 = scmp.ne.s32.totalorder %s142, %s144
    %p151 = scmp.eq.s32.totalorder %s24, 7
    %p152 = por %p150, %p151
    %p153 = scmp.ne.s32.totalorder %s144, %s145
    %p154 = scmp.eq.s32.totalorder %s24, 0
    %p155 = por %p153, %p154
    %p156 = scmp.ne.s32.totalorder %s144, %s145
    %p157 = scmp.eq.s32.totalorder %s25, 7
    %p158 = por %p156, %p157
    %p160 = scmp.ne.s32.totalorder %s145, %s159
    %p161 = scmp.eq.s32.totalorder %s25, 0
    %p162 = por %p160, %p161
    %s164 = sadd.s32 %s163, 1
    %p167 = scmp.eq.s32.totalorder %s19, 7
    %p168 = scmp.ne.s32.totalorder %s163, %s165
    %p169 = scmp.eq.s32.totalorder %s19, 0
    %p170 = por %p168, %p169
    %p171 = scmp.ne.s32.totalorder %s163, %s165
    %p172 = scmp.eq.s32.totalorder %s24, 7
    %p173 = por %p171, %p172
    %p174 = scmp.ne.s32.totalorder %s165, %s166
    %p175 = scmp.eq.s32.totalorder %s24, 0
    %p176 = por %p174, %p175
    %p177 = scmp.ne.s32.totalorder %s165, %s166
    %p178 = scmp.eq.s32.totalorder %s25, 7
    %p179 = por %p177, %p178
    %p181 = scmp.ne.s32.totalorder %s166, %s180
    %p182 = scmp.eq.s32.totalorder %s25, 0
    %p183 = por %p181, %p182
    %s185 = sadd.s32 %s184, 1
    %p188 = scmp.eq.s32.totalorder %s19, 7
    %p189 = scmp.ne.s32.totalorder %s184, %s186
    %p190 = scmp.eq.s32.totalorder %s19, 0
    %p191 = por %p189, %p190
    %p192 = scmp.ne.s32.totalorder %s184, %s186
    %p193 = scmp.eq.s32.totalorder %s24, 7
    %p194 = por %p192, %p193
    %p195 = scmp.ne.s32.totalorder %s186, %s187
    %p196 = scmp.eq.s32.totalorder %s24, 0
    %p197 = por %p195, %p196
    %p198 = scmp.ne.s32.totalorder %s186, %s187
    %p199 = scmp.eq.s32.totalorder %s25, 7
    %p200 = por %p198, %p199
    %p202 = scmp.ne.s32.totalorder %s187, %s201
    %p203 = scmp.eq.s32.totalorder %s25, 0
    %p204 = por %p202, %p203
    %s206 = sadd.s32 %s205, 1
    %p209 = scmp.eq.s32.totalorder %s19, 7
    %p210 = scmp.ne.s32.totalorder %s205, %s207
    %p211 = scmp.eq.s32.totalorder %s19, 0
    %p212 = por %p210, %p211
    %p213 = scmp.ne.s32.totalorder %s205, %s207
    %p214 = scmp.eq.s32.totalorder %s24, 7
    %p215 = por %p213, %p214
    %p216 = scmp.ne.s32.totalorder %s207, %s208
    %p217 = scmp.eq.s32.totalorder %s24, 0
    %p218 = por %p216, %p217
    %p219 = scmp.ne.s32.totalorder %s207, %s208
    %p220 = scmp.eq.s32.totalorder %s25, 7
    %p221 = por %p219, %p220
    %p223 = scmp.ne.s32.totalorder %s208, %s222
    %p224 = scmp.eq.s32.totalorder %s25, 0
    %p225 = por %p223, %p224
    %s227 = sadd.s32 %s226, 1
    %p230 = scmp.eq.s32.totalorder %s19, 7
    %p231 = scmp.ne.s32.totalorder %s226, %s228
    %p232 = scmp.eq.s32.totalorder %s19, 0
    %p233 = por %p231, %p232
    %p234 = scmp.ne.s32.totalorder %s226, %s228
    %p235 = scmp.eq.s32.totalorder %s24, 7
    %p236 = por %p234, %p235
    %p237 = scmp.ne.s32.totalorder %s228, %s229
    %p238 = scmp.eq.s32.totalorder %s24, 0
    %p239 = por %p237, %p238
    %p240 = scmp.ne.s32.totalorder %s228, %s229
    %p241 = scmp.eq.s32.totalorder %s25, 7
    %p242 = por %p240, %p241
    %p244 = scmp.ne.s32.totalorder %s229, %s243
    %p245 = scmp.eq.s32.totalorder %s25, 0
    %p246 = por %p244, %p245
    %s248 = sadd.s32 %s247, 1
    %p251 = scmp.eq.s32.totalorder %s19, 7
    %p252 = scmp.ne.s32.totalorder %s247, %s249
    %p253 = scmp.eq.s32.totalorder %s19, 0
    %p254 = por %p252, %p253
    %p255 = scmp.ne.s32.totalorder %s247, %s249
    %p256 = scmp.eq.s32.totalorder %s24, 7
    %p257 = por %p255, %p256
    %p258 = scmp.ne.s32.totalorder %s249, %s250
    %p259 = scmp.eq.s32.totalorder %s24, 0
    %p260 = por %p258, %p259
    %p261 = scmp.ne.s32.totalorder %s249, %s250
    %p262 = scmp.eq.s32.totalorder %s25, 7
    %p263 = por %p261, %p262
    %p265 = scmp.ne.s32.totalorder %s250, %s264
    %p266 = scmp.eq.s32.totalorder %s25, 0
    %p267 = por %p265, %p266
    %s269 = sadd.s32 %s268, 1
    %p272 = scmp.eq.s32.totalorder %s19, 7
    %p273 = scmp.ne.s32.totalorder %s268, %s270
    %p274 = scmp.eq.s32.totalorder %s19, 0
    %p275 = por %p273, %p274
    %p276 = scmp.ne.s32.totalorder %s268, %s270
    %p277 = scmp.eq.s32.totalorder %s24, 7
    %p278 = por %p276, %p277
    %p279 = scmp.ne.s32.totalorder %s270, %s271
    %p280 = scmp.eq.s32.totalorder %s24, 0
    %p281 = por %p279, %p280
    %p282 = scmp.ne.s32.totalorder %s270, %s271
    %p283 = scmp.eq.s32.totalorder %s25, 7
    %p284 = por %p282, %p283
    %p286 = scmp.ne.s32.totalorder %s271, %s285
    %p287 = scmp.eq.s32.totalorder %s25, 0
    %p288 = por %p286, %p287
    %s290 = sadd.s32 %s289, 1
    %p293 = scmp.eq.s32.totalorder %s19, 7
    %p294 = scmp.ne.s32.totalorder %s289, %s291
    %p295 = scmp.eq.s32.totalorder %s19, 0
    %p296 = por %p294, %p295
    %p297 = scmp.ne.s32.totalorder %s289, %s291
    %p298 = scmp.eq.s32.totalorder %s24, 7
    %p299 = por %p297, %p298
    %p300 = scmp.ne.s32.totalorder %s291, %s292
    %p301 = scmp.eq.s32.totalorder %s24, 0
    %p302 = por %p300, %p301
    %p303 = scmp.ne.s32.totalorder %s291, %s292
    %p304 = scmp.eq.s32.totalorder %s25, 7
    %p305 = por %p303, %p304
    %p307 = scmp.ne.s32.totalorder %s292, %s306
    %p308 = scmp.eq.s32.totalorder %s25, 0
    %p309 = por %p307, %p308
    %s310 = ssub.s32 %s19, %s26
    %p311 = scmp.eq.s32.totalorder %s310, 0
    %s313 = sadd.s32 %s312, 1
    %s314 = scalar_select %p311, %s312, %s313
    %p317 = pneg %p311
    %p318 = scmp.eq.s32.totalorder %s19, 7
    %p319 = por %p317, %p318
    %p320 = scmp.ne.s32.totalorder %s312, %s315
    %p321 = scmp.eq.s32.totalorder %s19, 0
    %p322 = por %p320, %p321
    %p323 = scmp.ne.s32.totalorder %s312, %s315
    %p324 = scmp.eq.s32.totalorder %s24, 7
    %p325 = por %p323, %p324
    %p326 = scmp.ne.s32.totalorder %s315, %s316
    %p327 = scmp.eq.s32.totalorder %s24, 0
    %p328 = por %p326, %p327
    %p329 = scmp.ne.s32.totalorder %s315, %s316
    %p330 = scmp.eq.s32.totalorder %s25, 7
    %p331 = por %p329, %p330
    %p333 = scmp.ne.s32.totalorder %s316, %s332
    %p334 = scmp.eq.s32.totalorder %s25, 0
    %p335 = por %p333, %p334
    %p336 = scmp.le.s32.totalorder 1, %s19
    %p337 = scmp.lt.s32.totalorder %s19, 9
    %p338 = pnand %p336, %p337
    %p339 = pneg %p338
    // Predicated region
    $region9: #{gcn_forward.1} parent=5 // pred_check
      _
    $region10: #{gcn_forward.1} parent=5 // pred_check_branch
      %341 = sbr.rel (%p338) target = $region12
    $region11: #{gcn_forward.1} parent=5 // pred_region
      %s342 = ssub.s32 %s19, 1
      // Predicated region
      $region13: #{gcn_forward.1} parent=11 // pred_check
        %p343 = pneg %p92
      $region14: #{gcn_forward.1} parent=11 // pred_check_branch
        %345 = sbr.rel (%p343) target = $region16
      $region15: #{gcn_forward.1} parent=11 // pred_region
        _
      $region16: #{gcn_forward.1} parent=11 // pred_fallthru
        _
      // Predicated region
      $region17: #{gcn_forward.1} parent=11 // pred_check
        %p346 = pneg %p113
      $region18: #{gcn_forward.1} parent=11 // pred_check_branch
        %348 = sbr.rel (%p346) target = $region20
      $region19: #{gcn_forward.1} parent=11 // pred_region
        _
      $region20: #{gcn_forward.1} parent=11 // pred_fallthru
        _
      // Predicated region
      $region21: #{gcn_forward.1} parent=11 // pred_check
        %p349 = pneg %p134
      $region22: #{gcn_forward.1} parent=11 // pred_check_branch
        %351 = sbr.rel (%p349) target = $region24
      $region23: #{gcn_forward.1} parent=11 // pred_region
        _
      $region24: #{gcn_forward.1} parent=11 // pred_fallthru
        _
      // Predicated region
      $region25: #{gcn_forward.1} parent=11 // pred_check
        %p352 = pneg %p155
      $region26: #{gcn_forward.1} parent=11 // pred_check_branch
        %354 = sbr.rel (%p352) target = $region28
      $region27: #{gcn_forward.1} parent=11 // pred_region
        _
      $region28: #{gcn_forward.1} parent=11 // pred_fallthru
        _
      // Predicated region
      $region29: #{gcn_forward.1} parent=11 // pred_check
        %p355 = pneg %p176
      $region30: #{gcn_forward.1} parent=11 // pred_check_branch
        %357 = sbr.rel (%p355) target = $region32
      $region31: #{gcn_forward.1} parent=11 // pred_region
        _
      $region32: #{gcn_forward.1} parent=11 // pred_fallthru
        _
      // Predicated region
      $region33: #{gcn_forward.1} parent=11 // pred_check
        %p358 = pneg %p197
      $region34: #{gcn_forward.1} parent=11 // pred_check_branch
        %360 = sbr.rel (%p358) target = $region36
      $region35: #{gcn_forward.1} parent=11 // pred_region
        _
      $region36: #{gcn_forward.1} parent=11 // pred_fallthru
        _
      // Predicated region
      $region37: #{gcn_forward.1} parent=11 // pred_check
        %p361 = pneg %p218
      $region38: #{gcn_forward.1} parent=11 // pred_check_branch
        %363 = sbr.rel (%p361) target = $region40
      $region39: #{gcn_forward.1} parent=11 // pred_region
        _
      $region40: #{gcn_forward.1} parent=11 // pred_fallthru
        _
      // Predicated region
      $region41: #{gcn_forward.1} parent=11 // pred_check
        %p364 = pneg %p239
      $region42: #{gcn_forward.1} parent=11 // pred_check_branch
        %366 = sbr.rel (%p364) target = $region44
      $region43: #{gcn_forward.1} parent=11 // pred_region
        _
      $region44: #{gcn_forward.1} parent=11 // pred_fallthru
        _
      // Predicated region
      $region45: #{gcn_forward.1} parent=11 // pred_check
        %p367 = pneg %p260
      $region46: #{gcn_forward.1} parent=11 // pred_check_branch
        %369 = sbr.rel (%p367) target = $region48
      $region47: #{gcn_forward.1} parent=11 // pred_region
        _
      $region48: #{gcn_forward.1} parent=11 // pred_fallthru
        _
      // Predicated region
      $region49: #{gcn_forward.1} parent=11 // pred_check
        %p370 = pneg %p281
      $region50: #{gcn_forward.1} parent=11 // pred_check_branch
        %372 = sbr.rel (%p370) target = $region52
      $region51: #{gcn_forward.1} parent=11 // pred_region
        _
      $region52: #{gcn_forward.1} parent=11 // pred_fallthru
        _
      // Predicated region
      $region53: #{gcn_forward.1} parent=11 // pred_check
        %p373 = pneg %p302
      $region54: #{gcn_forward.1} parent=11 // pred_check_branch
        %375 = sbr.rel (%p373) target = $region56
      $region55: #{gcn_forward.1} parent=11 // pred_region
        _
      $region56: #{gcn_forward.1} parent=11 // pred_fallthru
        _
    $region12: #{gcn_forward.1} parent=5 // pred_fallthru
      _
    %p376 = scmp.lt.s32.totalorder %s19, 8
    // Predicated region
    $region57: #{gcn_forward.1} parent=5 // pred_check
      %p377 = pneg %p376
    $region58: #{gcn_forward.1} parent=5 // pred_check_branch
      %379 = sbr.rel (%p377) target = $region60
    $region59: #{gcn_forward.1} parent=5 // pred_region
      // Predicated region
      $region61: #{gcn_forward.1} parent=59 // pred_check
        %p380 = pneg %p39
      $region62: #{gcn_forward.1} parent=59 // pred_check_branch
        %382 = sbr.rel (%p380) target = $region64
      $region63: #{gcn_forward.1} parent=59 // pred_region
        %p383 = scmp.lt.s32.totalorder %s19, 7
        %s384 = scalar_select %p383, %s19, 7
        %s385 = smul.addr %s384, 16
        %s386 = smul.addr %s385, 4
        %s387 = scalar_lea.vmem %s0, %s386
      $region64: #{gcn_forward.1} parent=59 // pred_fallthru
        _
      // Predicated region
      $region65: #{gcn_forward.1} parent=59 // pred_check
        %p388 = pneg %p65
      $region66: #{gcn_forward.1} parent=59 // pred_check_branch
        %390 = sbr.rel (%p388) target = $region68
      $region67: #{gcn_forward.1} parent=59 // pred_region
        %p391 = scmp.lt.s32.totalorder %s19, 7
        %s392 = scalar_select %p391, %s19, 7
        %s393 = smul.addr %s392, 16
        %s394 = smul.addr %s393, 4
        %s395 = scalar_lea.vmem %s1, %s394
      $region68: #{gcn_forward.1} parent=59 // pred_fallthru
        _
    $region60: #{gcn_forward.1} parent=5 // pred_fallthru
      _
    %p396 = scmp.le.s32.totalorder 1, %s19
    %p397 = scmp.lt.s32.totalorder %s19, 9
    %p398 = pnand %p396, %p397
    %p399 = pneg %p398
    // Predicated region
    $region69: #{gcn_forward.1} parent=5 // pred_check
      _
    $region70: #{gcn_forward.1} parent=5 // pred_check_branch
      %401 = sbr.rel (%p398) target = $region72
    $region71: #{gcn_forward.1} parent=5 // pred_region
      %s402 = ssub.s32 %s19, 1
      %p403 = scmp.lt.s32.totalorder %s24, 7
      %s404 = scalar_select %p403, %s24, 7
      %s405 = smul.addr %s404, 16
      %s406 = smul.addr %s405, 4
      %s407 = scalar_lea.vmem %s0, %s406
      %p408 = pneg %p45
      %p409 = pneg %p42
      %p410 = scmp.lt.s32.totalorder %s24, 7
      %s411 = scalar_select %p410, %s24, 7
      %s412 = smul.addr %s411, 16
      %s413 = smul.addr %s412, 4
      %s414 = scalar_lea.vmem %s1, %s413
      %p415 = pneg %p71
      %p416 = pneg %p68
      %p417 = pneg %p92
      %p418 = pneg %p89
      %p419 = pneg %p113
      %p420 = pneg %p110
      %p421 = pneg %p134
      %p422 = pneg %p131
      %p423 = pneg %p155
      %p424 = pneg %p152
      %p425 = pneg %p176
      %p426 = pneg %p173
      %p427 = pneg %p197
      %p428 = pneg %p194
      %p429 = pneg %p218
      %p430 = pneg %p215
      %p431 = pneg %p239
      %p432 = pneg %p236
      %p433 = pneg %p260
      %p434 = pneg %p257
      %p435 = pneg %p281
      %p436 = pneg %p278
      %p437 = pneg %p302
      %p438 = pneg %p299
      %p439 = pneg %p328
      %p440 = pneg %p325
      %p441 = scmp.lt.s32.totalorder %s24, 7
      %s442 = scalar_select %p441, %s24, 7
      %s443 = scalar_lea.vmem %s13, %s442
      %p444 = scmp.lt.s32.totalorder %s24, 7
      %s445 = scalar_select %p444, %s24, 7
      %s446 = smul.addr %s445, 16
      %s447 = smul.addr %s446, 4
      %s448 = scalar_lea.vmem %s0, %s447
      %p449 = scmp.lt.s32.totalorder %s24, 7
      %s450 = scalar_select %p449, %s24, 7
      %s451 = smul.addr %s450, 16
      %s452 = smul.addr %s451, 4
      %s453 = scalar_lea.vmem %s1, %s452
      %p454 = scmp.lt.s32.totalorder %s24, 7
      %s455 = scalar_select %p454, %s24, 7
      %s456 = scalar_lea.vmem %s13, %s455
      %v458 = vld [vmem:[%s448] sm:$0xf]
      %v459 = vld [vmem:[%s448 + $0x4] sm:$0xf]
      %v460 = vld [vmem:[%s448 + $0x8] sm:$0xf]
      %v461 = vld [vmem:[%s448 + $0xc] sm:$0xf]
      %v462 = vld [vmem:[%s448 + $0x10] sm:$0xf]
      %v463 = vld [vmem:[%s448 + $0x14] sm:$0xf]
      %v464 = vld [vmem:[%s448 + $0x18] sm:$0xf]
      %v465 = vld [vmem:[%s448 + $0x1c] sm:$0xf]
      %v466 = vld [vmem:[%s448 + $0x20] sm:$0xf]
      %v467 = vld [vmem:[%s448 + $0x24] sm:$0xf]
      %v468 = vld [vmem:[%s448 + $0x28] sm:$0xf]
      %v469 = vld [vmem:[%s448 + $0x2c] sm:$0xf]
      %v470 = vld [vmem:[%s448 + $0x30] sm:$0xf]
      %v471 = vld [vmem:[%s448 + $0x34] sm:$0xf]
      %v472 = vld [vmem:[%s448 + $0x38] sm:$0xf]
      %v473 = vld [vmem:[%s448 + $0x3c] sm:$0xf]
      %v474 = vld [vmem:[%s453] sm:$0xf]
      %v475 = vld [vmem:[%s453 + $0x4] sm:$0xf]
      %v476 = vld [vmem:[%s453 + $0x8] sm:$0xf]
      %v477 = vld [vmem:[%s453 + $0xc] sm:$0xf]
      %v478 = vld [vmem:[%s453 + $0x10] sm:$0xf]
      %v479 = vld [vmem:[%s453 + $0x14] sm:$0xf]
      %v480 = vld [vmem:[%s453 + $0x18] sm:$0xf]
      %v481 = vld [vmem:[%s453 + $0x1c] sm:$0xf]
      %v482 = vld [vmem:[%s453 + $0x20] sm:$0xf]
      %v483 = vld [vmem:[%s453 + $0x24] sm:$0xf]
      %v484 = vld [vmem:[%s453 + $0x28] sm:$0xf]
      %v485 = vld [vmem:[%s453 + $0x2c] sm:$0xf]
      %v486 = vld [vmem:[%s453 + $0x30] sm:$0xf]
      %v487 = vld [vmem:[%s453 + $0x34] sm:$0xf]
      %v488 = vld [vmem:[%s453 + $0x38] sm:$0xf]
      %v489 = vld [vmem:[%s453 + $0x3c] sm:$0xf]
      %v506 = vunpack.c.l.b16 %v458
      %v507 = vunpack.c.l.b16 %v459
      %v508 = vunpack.c.l.b16 %v460
      %v509 = vunpack.c.l.b16 %v461
      %v510 = vunpack.c.l.b16 %v462
      %v511 = vunpack.c.l.b16 %v463
      %v512 = vunpack.c.l.b16 %v464
      %v513 = vunpack.c.l.b16 %v465
      %v514 = vunpack.c.l.b16 %v466
      %v515 = vunpack.c.l.b16 %v467
      %v516 = vunpack.c.l.b16 %v468
      %v517 = vunpack.c.l.b16 %v469
      %v518 = vunpack.c.l.b16 %v470
      %v519 = vunpack.c.l.b16 %v471
      %v520 = vunpack.c.l.b16 %v472
      %v521 = vunpack.c.l.b16 %v473
      %v522 = vpack.c.b16 %v507, %v506
      %v523 = vpack.c.b16 %v509, %v508
      %v524 = vpack.c.b16 %v511, %v510
      %v525 = vpack.c.b16 %v513, %v512
      %v526 = vpack.c.b16 %v515, %v514
      %v527 = vpack.c.b16 %v517, %v516
      %v528 = vpack.c.b16 %v519, %v518
      %v529 = vpack.c.b16 %v521, %v520
      %v554 = vunpack.c.l.b16 %v474
      %v555 = vunpack.c.l.b16 %v475
      %v556 = vunpack.c.l.b16 %v476
      %v557 = vunpack.c.l.b16 %v477
      %v558 = vunpack.c.l.b16 %v478
      %v559 = vunpack.c.l.b16 %v479
      %v560 = vunpack.c.l.b16 %v480
      %v561 = vunpack.c.l.b16 %v481
      %v562 = vunpack.c.l.b16 %v482
      %v563 = vunpack.c.l.b16 %v483
      %v564 = vunpack.c.l.b16 %v484
      %v565 = vunpack.c.l.b16 %v485
      %v566 = vunpack.c.l.b16 %v486
      %v567 = vunpack.c.l.b16 %v487
      %v568 = vunpack.c.l.b16 %v488
      %v569 = vunpack.c.l.b16 %v489
      %v570 = vpack.c.b16 %v555, %v554
      %v571 = vpack.c.b16 %v557, %v556
      %v572 = vpack.c.b16 %v559, %v558
      %v573 = vpack.c.b16 %v561, %v560
      %v574 = vpack.c.b16 %v563, %v562
      %v575 = vpack.c.b16 %v565, %v564
      %v576 = vpack.c.b16 %v567, %v566
      %v577 = vpack.c.b16 %v569, %v568
      %586 = vmatprep.subr.bf16.mxu0 0
      %587 = vmatpush1.bf16.msra.mxu0 %v577
      %588 = vmatprep.subr.bf16.mxu0 0
      %589 = vmatpush1.bf16.msra.mxu0 %v576
      %590 = vmatprep.subr.bf16.mxu0 0
      %591 = vmatpush1.bf16.msra.mxu0 %v575
      %592 = vmatprep.subr.bf16.mxu0 0
      %593 = vmatpush1.bf16.msra.mxu0 %v574
      %594 = vmatprep.subr.bf16.mxu0 0
      %595 = vmatpush1.bf16.msra.mxu0 %v573
      %596 = vmatprep.subr.bf16.mxu0 0
      %597 = vmatpush1.bf16.msra.mxu0 %v572
      %598 = vmatprep.subr.bf16.mxu0 0
      %599 = vmatpush1.bf16.msra.mxu0 %v571
      %600 = vmatprep.subr.bf16.mxu0 0
      %601 = vmatpush1.bf16.msra.mxu0 %v570
      %602 = vmatprep.subr.bf16.mxu0 0
      %603 = vmatpush2.bf16.msra.mxu0 0
      %604 = vmatprep.subr.bf16.mxu0 0
      %605 = vmatpush2.bf16.msra.mxu0 0
      %606 = vmatprep.subr.bf16.mxu0 0
      %607 = vmatpush2.bf16.msra.mxu0 0
      %608 = vmatprep.subr.bf16.mxu0 0
      %609 = vmatpush2.bf16.msra.mxu0 0
      %610 = vmatprep.subr.bf16.mxu0 0
      %611 = vmatpush2.bf16.msra.mxu0 0
      %612 = vmatprep.subr.bf16.mxu0 0
      %613 = vmatpush2.bf16.msra.mxu0 0
      %614 = vmatprep.subr.bf16.mxu0 0
      %615 = vmatpush2.bf16.msra.mxu0 0
      %616 = vmatprep.subr.bf16.mxu0 0
      %617 = vmatpush2.bf16.msra.mxu0 0
      %618 = vmatprep.mubr.bf16.mxu0 0
      %619 = vmatmul.mubr.bf16.gmra.mxu0 %v522
      %v620 = vpop.f32.mrf.mxu0
      %v621 = vadd.f32 0.0, %v620
      %v622 = vpop.f32.mrf.mxu0
      %v623 = vpop.f32.mrf.mxu0
      %v624 = vadd.f32 0.0, %v623
      %v625 = vpop.f32.mrf.mxu0
      %626 = vmatprep.mubr.bf16.mxu0 0
      %627 = vmatmul.mubr.bf16.gmra.mxu0 %v523
      %v628 = vpop.f32.mrf.mxu0
      %v629 = vadd.f32 0.0, %v628
      %v630 = vpop.f32.mrf.mxu0
      %v631 = vpop.f32.mrf.mxu0
      %v632 = vadd.f32 0.0, %v631
      %v633 = vpop.f32.mrf.mxu0
      %634 = vmatprep.mubr.bf16.mxu0 0
      %635 = vmatmul.mubr.bf16.gmra.mxu0 %v524
      %v636 = vpop.f32.mrf.mxu0
      %v637 = vadd.f32 0.0, %v636
      %v638 = vpop.f32.mrf.mxu0
      %v639 = vpop.f32.mrf.mxu0
      %v640 = vadd.f32 0.0, %v639
      %v641 = vpop.f32.mrf.mxu0
      %642 = vmatprep.mubr.bf16.mxu0 0
      %643 = vmatmul.mubr.bf16.gmra.mxu0 %v525
      %v644 = vpop.f32.mrf.mxu0
      %v645 = vadd.f32 0.0, %v644
      %v646 = vpop.f32.mrf.mxu0
      %v647 = vpop.f32.mrf.mxu0
      %v648 = vadd.f32 0.0, %v647
      %v649 = vpop.f32.mrf.mxu0
      %650 = vmatprep.mubr.bf16.mxu0 0
      %651 = vmatmul.mubr.bf16.gmra.mxu0 %v526
      %v652 = vpop.f32.mrf.mxu0
      %v653 = vadd.f32 0.0, %v652
      %v654 = vpop.f32.mrf.mxu0
      %v655 = vpop.f32.mrf.mxu0
      %v656 = vadd.f32 0.0, %v655
      %v657 = vpop.f32.mrf.mxu0
      %658 = vmatprep.mubr.bf16.mxu0 0
      %659 = vmatmul.mubr.bf16.gmra.mxu0 %v527
      %v660 = vpop.f32.mrf.mxu0
      %v661 = vadd.f32 0.0, %v660
      %v662 = vpop.f32.mrf.mxu0
      %v663 = vpop.f32.mrf.mxu0
      %v664 = vadd.f32 0.0, %v663
      %v665 = vpop.f32.mrf.mxu0
      %666 = vmatprep.mubr.bf16.mxu0 0
      %667 = vmatmul.mubr.bf16.gmra.mxu0 %v528
      %v668 = vpop.f32.mrf.mxu0
      %v669 = vadd.f32 0.0, %v668
      %v670 = vpop.f32.mrf.mxu0
      %v671 = vpop.f32.mrf.mxu0
      %v672 = vadd.f32 0.0, %v671
      %v673 = vpop.f32.mrf.mxu0
      %674 = vmatprep.mubr.bf16.mxu0 0
      %675 = vmatmul.mubr.bf16.gmra.mxu0 %v529
      %v676 = vpop.f32.mrf.mxu0
      %v677 = vadd.f32 0.0, %v676
      %v678 = vpop.f32.mrf.mxu0
      %v679 = vpop.f32.mrf.mxu0
      %v680 = vadd.f32 0.0, %v679
      %v681 = vpop.f32.mrf.mxu0
      %682 = vdwg.mxu0
      %v683 = vld [vmem:[%s2] sm:$0xf]
      %v684 = vld [vmem:[%s2 + $0x4] sm:$0xf]
      %v685 = vld [vmem:[%s2 + $0x8] sm:$0xf]
      %v686 = vld [vmem:[%s2 + $0xc] sm:$0xf]
      %v687 = vpack.c.bf16 %v624, %v621
      %v688 = vpack.c.bf16 %v632, %v629
      %v689 = vpack.c.bf16 %v640, %v637
      %v690 = vpack.c.bf16 %v648, %v645
      %v691 = vpack.c.bf16 %v656, %v653
      %v692 = vpack.c.bf16 %v664, %v661
      %v693 = vpack.c.bf16 %v672, %v669
      %v694 = vpack.c.bf16 %v680, %v677
      %v695 = vld [vmem:[%s3] sm:$0x1]
      %v697 = vlaneseq
      %v698 = vshrl.u32 %v697, 7
      %v699 = vsub.s32 0, %v698
      %v700 = vrot.slane %v695, %v699
      %v706 = vunpack.c.l.b16 %v683
      %v707 = vunpack.c.l.b16 %v684
      %v708 = vunpack.c.l.b16 %v685
      %v709 = vunpack.c.l.b16 %v686
      %v710 = vpack.c.b16 %v707, %v706
      %v711 = vpack.c.b16 %v709, %v708
      %vm714 = vcmask 261120
      %v716 = vsel %vm714, %v687, 0
      %v719 = vsel %vm714, %v688, 0
      %v722 = vsel %vm714, %v689, 0
      %v725 = vsel %vm714, %v690, 0
      %v728 = vsel %vm714, %v691, 0
      %v731 = vsel %vm714, %v692, 0
      %v734 = vsel %vm714, %v693, 0
      %v737 = vsel %vm714, %v694, 0
      %739 = vmatprep.subr.bf16.mxu0 0
      %740 = vmatpush1.bf16.msra.mxu0 0
      %741 = vmatprep.subr.bf16.mxu0 0
      %742 = vmatpush1.bf16.msra.mxu0 0
      %743 = vmatprep.subr.bf16.mxu0 0
      %744 = vmatpush1.bf16.msra.mxu0 0
      %745 = vmatprep.subr.bf16.mxu0 0
      %746 = vmatpush1.bf16.msra.mxu0 0
      %747 = vmatprep.subr.bf16.mxu0 0
      %748 = vmatpush1.bf16.msra.mxu0 0
      %749 = vmatprep.subr.bf16.mxu0 0
      %750 = vmatpush1.bf16.msra.mxu0 0
      %751 = vmatprep.subr.bf16.mxu0 0
      %752 = vmatpush1.bf16.msra.mxu0 %v711
      %753 = vmatprep.subr.bf16.mxu0 0
      %754 = vmatpush1.bf16.msra.mxu0 %v710
      %755 = vmatprep.subr.bf16.mxu0 0
      %756 = vmatpush2.bf16.msra.mxu0 0
      %757 = vmatprep.subr.bf16.mxu0 0
      %758 = vmatpush2.bf16.msra.mxu0 0
      %759 = vmatprep.subr.bf16.mxu0 0
      %760 = vmatpush2.bf16.msra.mxu0 0
      %761 = vmatprep.subr.bf16.mxu0 0
      %762 = vmatpush2.bf16.msra.mxu0 0
      %763 = vmatprep.subr.bf16.mxu0 0
      %764 = vmatpush2.bf16.msra.mxu0 0
      %765 = vmatprep.subr.bf16.mxu0 0
      %766 = vmatpush2.bf16.msra.mxu0 0
      %767 = vmatprep.subr.bf16.mxu0 0
      %768 = vmatpush2.bf16.msra.mxu0 0
      %769 = vmatprep.subr.bf16.mxu0 0
      %770 = vmatpush2.bf16.msra.mxu0 0
      %771 = vmatprep.mubr.bf16.mxu0 0
      %772 = vmatmul.mubr.bf16.gmra.mxu0 %v716
      %v773 = vpop.f32.mrf.mxu0
      %v774 = vadd.f32 %v700, %v773
      %v775 = vpop.f32.mrf.mxu0
      %v776 = vpop.f32.mrf.mxu0
      %v777 = vadd.f32 %v700, %v776
      %v778 = vpop.f32.mrf.mxu0
      %779 = vmatprep.mubr.bf16.mxu0 0
      %780 = vmatmul.mubr.bf16.gmra.mxu0 %v719
      %v781 = vpop.f32.mrf.mxu0
      %v782 = vadd.f32 %v700, %v781
      %v783 = vpop.f32.mrf.mxu0
      %v784 = vpop.f32.mrf.mxu0
      %v785 = vadd.f32 %v700, %v784
      %v786 = vpop.f32.mrf.mxu0
      %787 = vmatprep.mubr.bf16.mxu0 0
      %788 = vmatmul.mubr.bf16.gmra.mxu0 %v722
      %v789 = vpop.f32.mrf.mxu0
      %v790 = vadd.f32 %v700, %v789
      %v791 = vpop.f32.mrf.mxu0
      %v792 = vpop.f32.mrf.mxu0
      %v793 = vadd.f32 %v700, %v792
      %v794 = vpop.f32.mrf.mxu0
      %795 = vmatprep.mubr.bf16.mxu0 0
      %796 = vmatmul.mubr.bf16.gmra.mxu0 %v725
      %v797 = vpop.f32.mrf.mxu0
      %v798 = vadd.f32 %v700, %v797
      %v799 = vpop.f32.mrf.mxu0
      %v800 = vpop.f32.mrf.mxu0
      %v801 = vadd.f32 %v700, %v800
      %v802 = vpop.f32.mrf.mxu0
      %803 = vmatprep.mubr.bf16.mxu0 0
      %804 = vmatmul.mubr.bf16.gmra.mxu0 %v728
      %v805 = vpop.f32.mrf.mxu0
      %v806 = vadd.f32 %v700, %v805
      %v807 = vpop.f32.mrf.mxu0
      %v808 = vpop.f32.mrf.mxu0
      %v809 = vadd.f32 %v700, %v808
      %v810 = vpop.f32.mrf.mxu0
      %811 = vmatprep.mubr.bf16.mxu0 0
      %812 = vmatmul.mubr.bf16.gmra.mxu0 %v731
      %v813 = vpop.f32.mrf.mxu0
      %v814 = vadd.f32 %v700, %v813
      %v815 = vpop.f32.mrf.mxu0
      %v816 = vpop.f32.mrf.mxu0
      %v817 = vadd.f32 %v700, %v816
      %v818 = vpop.f32.mrf.mxu0
      %819 = vmatprep.mubr.bf16.mxu0 0
      %820 = vmatmul.mubr.bf16.gmra.mxu0 %v734
      %v821 = vpop.f32.mrf.mxu0
      %v822 = vadd.f32 %v700, %v821
      %v823 = vpop.f32.mrf.mxu0
      %v824 = vpop.f32.mrf.mxu0
      %v825 = vadd.f32 %v700, %v824
      %v826 = vpop.f32.mrf.mxu0
      %827 = vmatprep.mubr.bf16.mxu0 0
      %828 = vmatmul.mubr.bf16.gmra.mxu0 %v737
      %v829 = vpop.f32.mrf.mxu0
      %v830 = vadd.f32 %v700, %v829
      %v831 = vpop.f32.mrf.mxu0
      %v832 = vpop.f32.mrf.mxu0
      %v833 = vadd.f32 %v700, %v832
      %v834 = vpop.f32.mrf.mxu0
      %835 = vdwg.mxu0
      %v836 = vmax.f32 %v774, 0.0
      %v837 = vmax.f32 %v777, 0.0
      %v838 = vmax.f32 %v782, 0.0
      %v839 = vmax.f32 %v785, 0.0
      %v840 = vmax.f32 %v790, 0.0
      %v841 = vmax.f32 %v793, 0.0
      %v842 = vmax.f32 %v798, 0.0
      %v843 = vmax.f32 %v801, 0.0
      %v844 = vmax.f32 %v806, 0.0
      %v845 = vmax.f32 %v809, 0.0
      %v846 = vmax.f32 %v814, 0.0
      %v847 = vmax.f32 %v817, 0.0
      %v848 = vmax.f32 %v822, 0.0
      %v849 = vmax.f32 %v825, 0.0
      %v850 = vmax.f32 %v830, 0.0
      %v851 = vmax.f32 %v833, 0.0
      %v852 = vld [vmem:[%s4] sm:$0xf]
      %v853 = vld [vmem:[%s4 + $0x4] sm:$0xf]
      %v854 = vld [vmem:[%s4 + $0x8] sm:$0xf]
      %v855 = vld [vmem:[%s4 + $0xc] sm:$0xf]
      %v856 = vld [vmem:[%s4 + $0x10] sm:$0xf]
      %v857 = vld [vmem:[%s4 + $0x14] sm:$0xf]
      %v858 = vld [vmem:[%s4 + $0x18] sm:$0xf]
      %v859 = vld [vmem:[%s4 + $0x1c] sm:$0xf]
      %v860 = vpack.c.bf16 %v837, %v836
      %v861 = vpack.c.bf16 %v839, %v838
      %v862 = vpack.c.bf16 %v841, %v840
      %v863 = vpack.c.bf16 %v843, %v842
      %v864 = vpack.c.bf16 %v845, %v844
      %v865 = vpack.c.bf16 %v847, %v846
      %v866 = vpack.c.bf16 %v849, %v848
      %v867 = vpack.c.bf16 %v851, %v850
      %v876 = vunpack.c.l.b16 %v852
      %v877 = vunpack.c.l.b16 %v853
      %v878 = vunpack.c.l.b16 %v854
      %v879 = vunpack.c.l.b16 %v855
      %v880 = vunpack.c.l.b16 %v856
      %v881 = vunpack.c.l.b16 %v857
      %v882 = vunpack.c.l.b16 %v858
      %v883 = vunpack.c.l.b16 %v859
      %v884 = vpack.c.b16 %v877, %v876
      %v885 = vpack.c.b16 %v879, %v878
      %v886 = vpack.c.b16 %v881, %v880
      %v887 = vpack.c.b16 %v883, %v882
      %vm892 = vcmask 523264
      %v894 = vsel %vm892, %v860, 0
      %v897 = vsel %vm892, %v861, 0
      %v900 = vsel %vm892, %v862, 0
      %v903 = vsel %vm892, %v863, 0
      %v906 = vsel %vm892, %v864, 0
      %v909 = vsel %vm892, %v865, 0
      %v912 = vsel %vm892, %v866, 0
      %v915 = vsel %vm892, %v867, 0
      %917 = vmatprep.subr.bf16.mxu0 0
      %918 = vmatpush1.bf16.msra.mxu0 0
      %919 = vmatprep.subr.bf16.mxu0 0
      %920 = vmatpush1.bf16.msra.mxu0 0
      %921 = vmatprep.subr.bf16.mxu0 0
      %922 = vmatpush1.bf16.msra.mxu0 0
      %923 = vmatprep.subr.bf16.mxu0 0
      %924 = vmatpush1.bf16.msra.mxu0 0
      %925 = vmatprep.subr.bf16.mxu0 0
      %926 = vmatpush1.bf16.msra.mxu0 %v887
      %927 = vmatprep.subr.bf16.mxu0 0
      %928 = vmatpush1.bf16.msra.mxu0 %v886
      %929 = vmatprep.subr.bf16.mxu0 0
      %930 = vmatpush1.bf16.msra.mxu0 %v885
      %931 = vmatprep.subr.bf16.mxu0 0
      %932 = vmatpush1.bf16.msra.mxu0 %v884
      %933 = vmatprep.subr.bf16.mxu0 0
      %934 = vmatpush2.bf16.msra.mxu0 0
      %935 = vmatprep.subr.bf16.mxu0 0
      %936 = vmatpush2.bf16.msra.mxu0 0
      %937 = vmatprep.subr.bf16.mxu0 0
      %938 = vmatpush2.bf16.msra.mxu0 0
      %939 = vmatprep.subr.bf16.mxu0 0
      %940 = vmatpush2.bf16.msra.mxu0 0
      %941 = vmatprep.subr.bf16.mxu0 0
      %942 = vmatpush2.bf16.msra.mxu0 0
      %943 = vmatprep.subr.bf16.mxu0 0
      %944 = vmatpush2.bf16.msra.mxu0 0
      %945 = vmatprep.subr.bf16.mxu0 0
      %946 = vmatpush2.bf16.msra.mxu0 0
      %947 = vmatprep.subr.bf16.mxu0 0
      %948 = vmatpush2.bf16.msra.mxu0 0
      %949 = vmatprep.mubr.bf16.mxu0 0
      %950 = vmatmul.mubr.bf16.gmra.mxu0 %v894
      %v951 = vpop.f32.mrf.mxu0
      %v952 = vadd.f32 0.0, %v951
      %v953 = vpop.f32.mrf.mxu0
      %v954 = vpop.f32.mrf.mxu0
      %v955 = vadd.f32 0.0, %v954
      %v956 = vpop.f32.mrf.mxu0
      %957 = vmatprep.mubr.bf16.mxu0 0
      %958 = vmatmul.mubr.bf16.gmra.mxu0 %v897
      %v959 = vpop.f32.mrf.mxu0
      %v960 = vadd.f32 0.0, %v959
      %v961 = vpop.f32.mrf.mxu0
      %v962 = vpop.f32.mrf.mxu0
      %v963 = vadd.f32 0.0, %v962
      %v964 = vpop.f32.mrf.mxu0
      %965 = vmatprep.mubr.bf16.mxu0 0
      %966 = vmatmul.mubr.bf16.gmra.mxu0 %v900
      %v967 = vpop.f32.mrf.mxu0
      %v968 = vadd.f32 0.0, %v967
      %v969 = vpop.f32.mrf.mxu0
      %v970 = vpop.f32.mrf.mxu0
      %v971 = vadd.f32 0.0, %v970
      %v972 = vpop.f32.mrf.mxu0
      %973 = vmatprep.mubr.bf16.mxu0 0
      %974 = vmatmul.mubr.bf16.gmra.mxu0 %v903
      %v975 = vpop.f32.mrf.mxu0
      %v976 = vadd.f32 0.0, %v975
      %v977 = vpop.f32.mrf.mxu0
      %v978 = vpop.f32.mrf.mxu0
      %v979 = vadd.f32 0.0, %v978
      %v980 = vpop.f32.mrf.mxu0
      %981 = vmatprep.mubr.bf16.mxu0 0
      %982 = vmatmul.mubr.bf16.gmra.mxu0 %v906
      %v983 = vpop.f32.mrf.mxu0
      %v984 = vadd.f32 0.0, %v983
      %v985 = vpop.f32.mrf.mxu0
      %v986 = vpop.f32.mrf.mxu0
      %v987 = vadd.f32 0.0, %v986
      %v988 = vpop.f32.mrf.mxu0
      %989 = vmatprep.mubr.bf16.mxu0 0
      %990 = vmatmul.mubr.bf16.gmra.mxu0 %v909
      %v991 = vpop.f32.mrf.mxu0
      %v992 = vadd.f32 0.0, %v991
      %v993 = vpop.f32.mrf.mxu0
      %v994 = vpop.f32.mrf.mxu0
      %v995 = vadd.f32 0.0, %v994
      %v996 = vpop.f32.mrf.mxu0
      %997 = vmatprep.mubr.bf16.mxu0 0
      %998 = vmatmul.mubr.bf16.gmra.mxu0 %v912
      %v999 = vpop.f32.mrf.mxu0
      %v1000 = vadd.f32 0.0, %v999
      %v1001 = vpop.f32.mrf.mxu0
      %v1002 = vpop.f32.mrf.mxu0
      %v1003 = vadd.f32 0.0, %v1002
      %v1004 = vpop.f32.mrf.mxu0
      %1005 = vmatprep.mubr.bf16.mxu0 0
      %1006 = vmatmul.mubr.bf16.gmra.mxu0 %v915
      %v1007 = vpop.f32.mrf.mxu0
      %v1008 = vadd.f32 0.0, %v1007
      %v1009 = vpop.f32.mrf.mxu0
      %v1010 = vpop.f32.mrf.mxu0
      %v1011 = vadd.f32 0.0, %v1010
      %v1012 = vpop.f32.mrf.mxu0
      %1013 = vdwg.mxu0
      %v1014 = vpack.c.bf16 %v955, %v952
      %v1015 = vpack.c.bf16 %v963, %v960
      %v1016 = vpack.c.bf16 %v971, %v968
      %v1017 = vpack.c.bf16 %v979, %v976
      %v1018 = vpack.c.bf16 %v987, %v984
      %v1019 = vpack.c.bf16 %v995, %v992
      %v1020 = vpack.c.bf16 %v1003, %v1000
      %v1021 = vpack.c.bf16 %v1011, %v1008
      %v1022 = vld [vmem:[%s5] sm:$0x1]
      %v1024 = vlaneseq
      %v1025 = vshrl.u32 %v1024, 7
      %v1026 = vsub.s32 0, %v1025
      %v1027 = vrot.slane %v1022, %v1026
      %1029 = vmatprep.subr.bf16.mxu0 0
      %1030 = vmatpush1.bf16.msra.mxu0 %v1021
      %1031 = vmatprep.subr.bf16.mxu0 0
      %1032 = vmatpush1.bf16.msra.mxu0 %v1020
      %1033 = vmatprep.subr.bf16.mxu0 0
      %1034 = vmatpush1.bf16.msra.mxu0 %v1019
      %1035 = vmatprep.subr.bf16.mxu0 0
      %1036 = vmatpush1.bf16.msra.mxu0 %v1018
      %1037 = vmatprep.subr.bf16.mxu0 0
      %1038 = vmatpush1.bf16.msra.mxu0 %v1017
      %1039 = vmatprep.subr.bf16.mxu0 0
      %1040 = vmatpush1.bf16.msra.mxu0 %v1016
      %1041 = vmatprep.subr.bf16.mxu0 0
      %1042 = vmatpush1.bf16.msra.mxu0 %v1015
      %1043 = vmatprep.subr.bf16.mxu0 0
      %1044 = vmatpush1.bf16.msra.mxu0 %v1014
      %1045 = vmatprep.subr.bf16.mxu0 0
      %1046 = vmatpush2.bf16.msra.mxu0 0
      %1047 = vmatprep.subr.bf16.mxu0 0
      %1048 = vmatpush2.bf16.msra.mxu0 0
      %1049 = vmatprep.subr.bf16.mxu0 0
      %1050 = vmatpush2.bf16.msra.mxu0 0
      %1051 = vmatprep.subr.bf16.mxu0 0
      %1052 = vmatpush2.bf16.msra.mxu0 0
      %1053 = vmatprep.subr.bf16.mxu0 0
      %1054 = vmatpush2.bf16.msra.mxu0 0
      %1055 = vmatprep.subr.bf16.mxu0 0
      %1056 = vmatpush2.bf16.msra.mxu0 0
      %1057 = vmatprep.subr.bf16.mxu0 0
      %1058 = vmatpush2.bf16.msra.mxu0 0
      %1059 = vmatprep.subr.bf16.mxu0 0
      %1060 = vmatpush2.bf16.msra.mxu0 0
      %1061 = vmatprep.mubr.bf16.mxu0 0
      %1062 = vmatmul.mubr.bf16.gmra.mxu0 %v522
      %v1063 = vpop.f32.mrf.mxu0
      %v1064 = vadd.f32 %v1027, %v1063
      %v1065 = vpop.f32.mrf.mxu0
      %v1066 = vpop.f32.mrf.mxu0
      %v1067 = vadd.f32 %v1027, %v1066
      %v1068 = vpop.f32.mrf.mxu0
      %1069 = vmatprep.mubr.bf16.mxu0 0
      %1070 = vmatmul.mubr.bf16.gmra.mxu0 %v523
      %v1071 = vpop.f32.mrf.mxu0
      %v1072 = vadd.f32 %v1027, %v1071
      %v1073 = vpop.f32.mrf.mxu0
      %v1074 = vpop.f32.mrf.mxu0
      %v1075 = vadd.f32 %v1027, %v1074
      %v1076 = vpop.f32.mrf.mxu0
      %1077 = vmatprep.mubr.bf16.mxu0 0
      %1078 = vmatmul.mubr.bf16.gmra.mxu0 %v524
      %v1079 = vpop.f32.mrf.mxu0
      %v1080 = vadd.f32 %v1027, %v1079
      %v1081 = vpop.f32.mrf.mxu0
      %v1082 = vpop.f32.mrf.mxu0
      %v1083 = vadd.f32 %v1027, %v1082
      %v1084 = vpop.f32.mrf.mxu0
      %1085 = vmatprep.mubr.bf16.mxu0 0
      %1086 = vmatmul.mubr.bf16.gmra.mxu0 %v525
      %v1087 = vpop.f32.mrf.mxu0
      %v1088 = vadd.f32 %v1027, %v1087
      %v1089 = vpop.f32.mrf.mxu0
      %v1090 = vpop.f32.mrf.mxu0
      %v1091 = vadd.f32 %v1027, %v1090
      %v1092 = vpop.f32.mrf.mxu0
      %1093 = vmatprep.mubr.bf16.mxu0 0
      %1094 = vmatmul.mubr.bf16.gmra.mxu0 %v526
      %v1095 = vpop.f32.mrf.mxu0
      %v1096 = vadd.f32 %v1027, %v1095
      %v1097 = vpop.f32.mrf.mxu0
      %v1098 = vpop.f32.mrf.mxu0
      %v1099 = vadd.f32 %v1027, %v1098
      %v1100 = vpop.f32.mrf.mxu0
      %1101 = vmatprep.mubr.bf16.mxu0 0
      %1102 = vmatmul.mubr.bf16.gmra.mxu0 %v527
      %v1103 = vpop.f32.mrf.mxu0
      %v1104 = vadd.f32 %v1027, %v1103
      %v1105 = vpop.f32.mrf.mxu0
      %v1106 = vpop.f32.mrf.mxu0
      %v1107 = vadd.f32 %v1027, %v1106
      %v1108 = vpop.f32.mrf.mxu0
      %1109 = vmatprep.mubr.bf16.mxu0 0
      %1110 = vmatmul.mubr.bf16.gmra.mxu0 %v528
      %v1111 = vpop.f32.mrf.mxu0
      %v1112 = vadd.f32 %v1027, %v1111
      %v1113 = vpop.f32.mrf.mxu0
      %v1114 = vpop.f32.mrf.mxu0
      %v1115 = vadd.f32 %v1027, %v1114
      %v1116 = vpop.f32.mrf.mxu0
      %1117 = vmatprep.mubr.bf16.mxu0 0
      %1118 = vmatmul.mubr.bf16.gmra.mxu0 %v529
      %v1119 = vpop.f32.mrf.mxu0
      %v1120 = vadd.f32 %v1027, %v1119
      %v1121 = vpop.f32.mrf.mxu0
      %v1122 = vpop.f32.mrf.mxu0
      %v1123 = vadd.f32 %v1027, %v1122
      %v1124 = vpop.f32.mrf.mxu0
      %1125 = vdwg.mxu0
      %v1126 = vmax.f32 %v1064, 0.0
      %v1127 = vmax.f32 %v1067, 0.0
      %v1128 = vmax.f32 %v1072, 0.0
      %v1129 = vmax.f32 %v1075, 0.0
      %v1130 = vmax.f32 %v1080, 0.0
      %v1131 = vmax.f32 %v1083, 0.0
      %v1132 = vmax.f32 %v1088, 0.0
      %v1133 = vmax.f32 %v1091, 0.0
      %v1134 = vmax.f32 %v1096, 0.0
      %v1135 = vmax.f32 %v1099, 0.0
      %v1136 = vmax.f32 %v1104, 0.0
      %v1137 = vmax.f32 %v1107, 0.0
      %v1138 = vmax.f32 %v1112, 0.0
      %v1139 = vmax.f32 %v1115, 0.0
      %v1140 = vmax.f32 %v1120, 0.0
      %v1141 = vmax.f32 %v1123, 0.0
      %v1142 = vld [vmem:[%s6] sm:$0xf]
      %v1143 = vld [vmem:[%s6 + $0x4] sm:$0xf]
      %v1144 = vld [vmem:[%s6 + $0x8] sm:$0xf]
      %v1145 = vld [vmem:[%s6 + $0xc] sm:$0xf]
      %v1146 = vpack.c.bf16 %v1127, %v1126
      %v1147 = vpack.c.bf16 %v1129, %v1128
      %v1148 = vpack.c.bf16 %v1131, %v1130
      %v1149 = vpack.c.bf16 %v1133, %v1132
      %v1150 = vpack.c.bf16 %v1135, %v1134
      %v1151 = vpack.c.bf16 %v1137, %v1136
      %v1152 = vpack.c.bf16 %v1139, %v1138
      %v1153 = vpack.c.bf16 %v1141, %v1140
      %v1158 = vunpack.c.l.b16 %v1142
      %v1159 = vunpack.c.l.b16 %v1143
      %v1160 = vunpack.c.l.b16 %v1144
      %v1161 = vunpack.c.l.b16 %v1145
      %v1162 = vpack.c.b16 %v1159, %v1158
      %v1163 = vpack.c.b16 %v1161, %v1160
      %v1167 = vsel %vm714, %v1146, 0
      %v1170 = vsel %vm714, %v1147, 0
      %v1173 = vsel %vm714, %v1148, 0
      %v1176 = vsel %vm714, %v1149, 0
      %v1179 = vsel %vm714, %v1150, 0
      %v1182 = vsel %vm714, %v1151, 0
      %v1185 = vsel %vm714, %v1152, 0
      %v1188 = vsel %vm714, %v1153, 0
      %1190 = vmatprep.subr.bf16.mxu0 0
      %1191 = vmatpush1.bf16.msra.mxu0 0
      %1192 = vmatprep.subr.bf16.mxu0 0
      %1193 = vmatpush1.bf16.msra.mxu0 0
      %1194 = vmatprep.subr.bf16.mxu0 0
      %1195 = vmatpush1.bf16.msra.mxu0 0
      %1196 = vmatprep.subr.bf16.mxu0 0
      %1197 = vmatpush1.bf16.msra.mxu0 0
      %1198 = vmatprep.subr.bf16.mxu0 0
      %1199 = vmatpush1.bf16.msra.mxu0 0
      %1200 = vmatprep.subr.bf16.mxu0 0
      %1201 = vmatpush1.bf16.msra.mxu0 0
      %1202 = vmatprep.subr.bf16.mxu0 0
      %1203 = vmatpush1.bf16.msra.mxu0 %v1163
      %1204 = vmatprep.subr.bf16.mxu0 0
      %1205 = vmatpush1.bf16.msra.mxu0 %v1162
      %1206 = vmatprep.subr.bf16.mxu0 0
      %1207 = vmatpush2.bf16.msra.mxu0 0
      %1208 = vmatprep.subr.bf16.mxu0 0
      %1209 = vmatpush2.bf16.msra.mxu0 0
      %1210 = vmatprep.subr.bf16.mxu0 0
      %1211 = vmatpush2.bf16.msra.mxu0 0
      %1212 = vmatprep.subr.bf16.mxu0 0
      %1213 = vmatpush2.bf16.msra.mxu0 0
      %1214 = vmatprep.subr.bf16.mxu0 0
      %1215 = vmatpush2.bf16.msra.mxu0 0
      %1216 = vmatprep.subr.bf16.mxu0 0
      %1217 = vmatpush2.bf16.msra.mxu0 0
      %1218 = vmatprep.subr.bf16.mxu0 0
      %1219 = vmatpush2.bf16.msra.mxu0 0
      %1220 = vmatprep.subr.bf16.mxu0 0
      %1221 = vmatpush2.bf16.msra.mxu0 0
      %1222 = vmatprep.mubr.bf16.mxu0 0
      %1223 = vmatmul.mubr.bf16.gmra.mxu0 %v1167
      %v1224 = vpop.f32.mrf.mxu0
      %v1225 = vadd.f32 0.0, %v1224
      %v1226 = vpop.f32.mrf.mxu0
      %v1227 = vpop.f32.mrf.mxu0
      %v1228 = vadd.f32 0.0, %v1227
      %v1229 = vpop.f32.mrf.mxu0
      %1230 = vmatprep.mubr.bf16.mxu0 0
      %1231 = vmatmul.mubr.bf16.gmra.mxu0 %v1170
      %v1232 = vpop.f32.mrf.mxu0
      %v1233 = vadd.f32 0.0, %v1232
      %v1234 = vpop.f32.mrf.mxu0
      %v1235 = vpop.f32.mrf.mxu0
      %v1236 = vadd.f32 0.0, %v1235
      %v1237 = vpop.f32.mrf.mxu0
      %1238 = vmatprep.mubr.bf16.mxu0 0
      %1239 = vmatmul.mubr.bf16.gmra.mxu0 %v1173
      %v1240 = vpop.f32.mrf.mxu0
      %v1241 = vadd.f32 0.0, %v1240
      %v1242 = vpop.f32.mrf.mxu0
      %v1243 = vpop.f32.mrf.mxu0
      %v1244 = vadd.f32 0.0, %v1243
      %v1245 = vpop.f32.mrf.mxu0
      %1246 = vmatprep.mubr.bf16.mxu0 0
      %1247 = vmatmul.mubr.bf16.gmra.mxu0 %v1176
      %v1248 = vpop.f32.mrf.mxu0
      %v1249 = vadd.f32 0.0, %v1248
      %v1250 = vpop.f32.mrf.mxu0
      %v1251 = vpop.f32.mrf.mxu0
      %v1252 = vadd.f32 0.0, %v1251
      %v1253 = vpop.f32.mrf.mxu0
      %1254 = vmatprep.mubr.bf16.mxu0 0
      %1255 = vmatmul.mubr.bf16.gmra.mxu0 %v1179
      %v1256 = vpop.f32.mrf.mxu0
      %v1257 = vadd.f32 0.0, %v1256
      %v1258 = vpop.f32.mrf.mxu0
      %v1259 = vpop.f32.mrf.mxu0
      %v1260 = vadd.f32 0.0, %v1259
      %v1261 = vpop.f32.mrf.mxu0
      %1262 = vmatprep.mubr.bf16.mxu0 0
      %1263 = vmatmul.mubr.bf16.gmra.mxu0 %v1182
      %v1264 = vpop.f32.mrf.mxu0
      %v1265 = vadd.f32 0.0, %v1264
      %v1266 = vpop.f32.mrf.mxu0
      %v1267 = vpop.f32.mrf.mxu0
      %v1268 = vadd.f32 0.0, %v1267
      %v1269 = vpop.f32.mrf.mxu0
      %1270 = vmatprep.mubr.bf16.mxu0 0
      %1271 = vmatmul.mubr.bf16.gmra.mxu0 %v1185
      %v1272 = vpop.f32.mrf.mxu0
      %v1273 = vadd.f32 0.0, %v1272
      %v1274 = vpop.f32.mrf.mxu0
      %v1275 = vpop.f32.mrf.mxu0
      %v1276 = vadd.f32 0.0, %v1275
      %v1277 = vpop.f32.mrf.mxu0
      %1278 = vmatprep.mubr.bf16.mxu0 0
      %1279 = vmatmul.mubr.bf16.gmra.mxu0 %v1188
      %v1280 = vpop.f32.mrf.mxu0
      %v1281 = vadd.f32 0.0, %v1280
      %v1282 = vpop.f32.mrf.mxu0
      %v1283 = vpop.f32.mrf.mxu0
      %v1284 = vadd.f32 0.0, %v1283
      %v1285 = vpop.f32.mrf.mxu0
      %1286 = vdwg.mxu0
      %v1287 = vpack.c.bf16 %v1228, %v1225
      %v1288 = vpack.c.bf16 %v1236, %v1233
      %v1289 = vpack.c.bf16 %v1244, %v1241
      %v1290 = vpack.c.bf16 %v1252, %v1249
      %v1291 = vpack.c.bf16 %v1260, %v1257
      %v1292 = vpack.c.bf16 %v1268, %v1265
      %v1293 = vpack.c.bf16 %v1276, %v1273
      %v1294 = vpack.c.bf16 %v1284, %v1281
      %v1295 = vld [vmem:[%s7] sm:$0x1]
      %v1297 = vlaneseq
      %v1298 = vshrl.u32 %v1297, 7
      %v1299 = vsub.s32 0, %v1298
      %v1300 = vrot.slane %v1295, %v1299
      %1302 = vmatprep.subr.bf16.mxu0 0
      %1303 = vmatpush1.bf16.msra.mxu0 %v1294
      %1304 = vmatprep.subr.bf16.mxu0 0
      %1305 = vmatpush1.bf16.msra.mxu0 %v1293
      %1306 = vmatprep.subr.bf16.mxu0 0
      %1307 = vmatpush1.bf16.msra.mxu0 %v1292
      %1308 = vmatprep.subr.bf16.mxu0 0
      %1309 = vmatpush1.bf16.msra.mxu0 %v1291
      %1310 = vmatprep.subr.bf16.mxu0 0
      %1311 = vmatpush1.bf16.msra.mxu0 %v1290
      %1312 = vmatprep.subr.bf16.mxu0 0
      %1313 = vmatpush1.bf16.msra.mxu0 %v1289
      %1314 = vmatprep.subr.bf16.mxu0 0
      %1315 = vmatpush1.bf16.msra.mxu0 %v1288
      %1316 = vmatprep.subr.bf16.mxu0 0
      %1317 = vmatpush1.bf16.msra.mxu0 %v1287
      %1318 = vmatprep.subr.bf16.mxu0 0
      %1319 = vmatpush2.bf16.msra.mxu0 0
      %1320 = vmatprep.subr.bf16.mxu0 0
      %1321 = vmatpush2.bf16.msra.mxu0 0
      %1322 = vmatprep.subr.bf16.mxu0 0
      %1323 = vmatpush2.bf16.msra.mxu0 0
      %1324 = vmatprep.subr.bf16.mxu0 0
      %1325 = vmatpush2.bf16.msra.mxu0 0
      %1326 = vmatprep.subr.bf16.mxu0 0
      %1327 = vmatpush2.bf16.msra.mxu0 0
      %1328 = vmatprep.subr.bf16.mxu0 0
      %1329 = vmatpush2.bf16.msra.mxu0 0
      %1330 = vmatprep.subr.bf16.mxu0 0
      %1331 = vmatpush2.bf16.msra.mxu0 0
      %1332 = vmatprep.subr.bf16.mxu0 0
      %1333 = vmatpush2.bf16.msra.mxu0 0
      %1334 = vmatprep.mubr.bf16.mxu0 0
      %1335 = vmatmul.mubr.bf16.gmra.mxu0 %v522
      %v1336 = vpop.f32.mrf.mxu0
      %v1337 = vadd.f32 %v1300, %v1336
      %v1338 = vpop.f32.mrf.mxu0
      %v1339 = vpop.f32.mrf.mxu0
      %v1340 = vadd.f32 %v1300, %v1339
      %v1341 = vpop.f32.mrf.mxu0
      %1342 = vmatprep.mubr.bf16.mxu0 0
      %1343 = vmatmul.mubr.bf16.gmra.mxu0 %v523
      %v1344 = vpop.f32.mrf.mxu0
      %v1345 = vadd.f32 %v1300, %v1344
      %v1346 = vpop.f32.mrf.mxu0
      %v1347 = vpop.f32.mrf.mxu0
      %v1348 = vadd.f32 %v1300, %v1347
      %v1349 = vpop.f32.mrf.mxu0
      %1350 = vmatprep.mubr.bf16.mxu0 0
      %1351 = vmatmul.mubr.bf16.gmra.mxu0 %v524
      %v1352 = vpop.f32.mrf.mxu0
      %v1353 = vadd.f32 %v1300, %v1352
      %v1354 = vpop.f32.mrf.mxu0
      %v1355 = vpop.f32.mrf.mxu0
      %v1356 = vadd.f32 %v1300, %v1355
      %v1357 = vpop.f32.mrf.mxu0
      %1358 = vmatprep.mubr.bf16.mxu0 0
      %1359 = vmatmul.mubr.bf16.gmra.mxu0 %v525
      %v1360 = vpop.f32.mrf.mxu0
      %v1361 = vadd.f32 %v1300, %v1360
      %v1362 = vpop.f32.mrf.mxu0
      %v1363 = vpop.f32.mrf.mxu0
      %v1364 = vadd.f32 %v1300, %v1363
      %v1365 = vpop.f32.mrf.mxu0
      %1366 = vmatprep.mubr.bf16.mxu0 0
      %1367 = vmatmul.mubr.bf16.gmra.mxu0 %v526
      %v1368 = vpop.f32.mrf.mxu0
      %v1369 = vadd.f32 %v1300, %v1368
      %v1370 = vpop.f32.mrf.mxu0
      %v1371 = vpop.f32.mrf.mxu0
      %v1372 = vadd.f32 %v1300, %v1371
      %v1373 = vpop.f32.mrf.mxu0
      %1374 = vmatprep.mubr.bf16.mxu0 0
      %1375 = vmatmul.mubr.bf16.gmra.mxu0 %v527
      %v1376 = vpop.f32.mrf.mxu0
      %v1377 = vadd.f32 %v1300, %v1376
      %v1378 = vpop.f32.mrf.mxu0
      %v1379 = vpop.f32.mrf.mxu0
      %v1380 = vadd.f32 %v1300, %v1379
      %v1381 = vpop.f32.mrf.mxu0
      %1382 = vmatprep.mubr.bf16.mxu0 0
      %1383 = vmatmul.mubr.bf16.gmra.mxu0 %v528
      %v1384 = vpop.f32.mrf.mxu0
      %v1385 = vadd.f32 %v1300, %v1384
      %v1386 = vpop.f32.mrf.mxu0
      %v1387 = vpop.f32.mrf.mxu0
      %v1388 = vadd.f32 %v1300, %v1387
      %v1389 = vpop.f32.mrf.mxu0
      %1390 = vmatprep.mubr.bf16.mxu0 0
      %1391 = vmatmul.mubr.bf16.gmra.mxu0 %v529
      %v1392 = vpop.f32.mrf.mxu0
      %v1393 = vadd.f32 %v1300, %v1392
      %v1394 = vpop.f32.mrf.mxu0
      %v1395 = vpop.f32.mrf.mxu0
      %v1396 = vadd.f32 %v1300, %v1395
      %v1397 = vpop.f32.mrf.mxu0
      %1398 = vdwg.mxu0
      %v1399 = vmax.f32 %v1337, 0.0
      %v1400 = vmax.f32 %v1340, 0.0
      %v1401 = vmax.f32 %v1345, 0.0
      %v1402 = vmax.f32 %v1348, 0.0
      %v1403 = vmax.f32 %v1353, 0.0
      %v1404 = vmax.f32 %v1356, 0.0
      %v1405 = vmax.f32 %v1361, 0.0
      %v1406 = vmax.f32 %v1364, 0.0
      %v1407 = vmax.f32 %v1369, 0.0
      %v1408 = vmax.f32 %v1372, 0.0
      %v1409 = vmax.f32 %v1377, 0.0
      %v1410 = vmax.f32 %v1380, 0.0
      %v1411 = vmax.f32 %v1385, 0.0
      %v1412 = vmax.f32 %v1388, 0.0
      %v1413 = vmax.f32 %v1393, 0.0
      %v1414 = vmax.f32 %v1396, 0.0
      %1415 = vmatprep.subr.mxu0 0.0
      %1416 = vmatpush1.msra.mxu0 %v1414
      %1417 = vmatprep.subr.mxu0 0.0
      %1418 = vmatpush1.msra.mxu0 %v1413
      %1419 = vmatprep.subr.mxu0 0.0
      %1420 = vmatpush1.msra.mxu0 %v1412
      %1421 = vmatprep.subr.mxu0 0.0
      %1422 = vmatpush1.msra.mxu0 %v1411
      %1423 = vmatprep.subr.mxu0 0.0
      %1424 = vmatpush1.msra.mxu0 %v1410
      %1425 = vmatprep.subr.mxu0 0.0
      %1426 = vmatpush1.msra.mxu0 %v1409
      %1427 = vmatprep.subr.mxu0 0.0
      %1428 = vmatpush1.msra.mxu0 %v1408
      %1429 = vmatprep.subr.mxu0 0.0
      %1430 = vmatpush1.msra.mxu0 %v1407
      %1431 = vmatprep.subr.mxu0 0.0
      %1432 = vmatpush1.msra.mxu0 %v1406
      %1433 = vmatprep.subr.mxu0 0.0
      %1434 = vmatpush1.msra.mxu0 %v1405
      %1435 = vmatprep.subr.mxu0 0.0
      %1436 = vmatpush1.msra.mxu0 %v1404
      %1437 = vmatprep.subr.mxu0 0.0
      %1438 = vmatpush1.msra.mxu0 %v1403
      %1439 = vmatprep.subr.mxu0 0.0
      %1440 = vmatpush1.msra.mxu0 %v1402
      %1441 = vmatprep.subr.mxu0 0.0
      %1442 = vmatpush1.msra.mxu0 %v1401
      %1443 = vmatprep.subr.mxu0 0.0
      %1444 = vmatpush1.msra.mxu0 %v1400
      %1445 = vmatprep.subr.mxu0 0.0
      %1446 = vmatpush1.msra.mxu0 %v1399
      %1447 = vmatprep.subr.mxu0 0.0
      %1448 = vmatpush2.msra.mxu0 0.0
      %1449 = vmatprep.subr.mxu0 0.0
      %1450 = vmatpush2.msra.mxu0 0.0
      %1451 = vmatprep.subr.mxu0 0.0
      %1452 = vmatpush2.msra.mxu0 0.0
      %1453 = vmatprep.subr.mxu0 0.0
      %1454 = vmatpush2.msra.mxu0 0.0
      %1455 = vmatprep.subr.mxu0 0.0
      %1456 = vmatpush2.msra.mxu0 0.0
      %1457 = vmatprep.subr.mxu0 0.0
      %1458 = vmatpush2.msra.mxu0 0.0
      %1459 = vmatprep.subr.mxu0 0.0
      %1460 = vmatpush2.msra.mxu0 0.0
      %1461 = vmatprep.subr.mxu0 0.0
      %1462 = vmatpush2.msra.mxu0 0.0
      %1463 = vmatprep.subr.mxu0 0.0
      %1464 = vmatpush2.msra.mxu0 0.0
      %1465 = vmatprep.subr.mxu0 0.0
      %1466 = vmatpush2.msra.mxu0 0.0
      %1467 = vmatprep.subr.mxu0 0.0
      %1468 = vmatpush2.msra.mxu0 0.0
      %1469 = vmatprep.subr.mxu0 0.0
      %1470 = vmatpush2.msra.mxu0 0.0
      %1471 = vmatprep.subr.mxu0 0.0
      %1472 = vmatpush2.msra.mxu0 0.0
      %1473 = vmatprep.subr.mxu0 0.0
      %1474 = vmatpush2.msra.mxu0 0.0
      %1475 = vmatprep.subr.mxu0 0.0
      %1476 = vmatpush2.msra.mxu0 0.0
      %1477 = vmatprep.subr.mxu0 0.0
      %1478 = vmatpush2.msra.mxu0 0.0
      %1479 = vmatprep.mubr.f32.mxu0 0.0
      %1480 = vmatmul.mubr.f32.gmra.mxu0 0.0078125
      %v1481 = vpop.f32.mrf.mxu0
      %v1482 = vadd.f32 0.0, %v1481
      %v1483 = vpop.f32.mrf.mxu0
      %1484 = vdwg.mxu0
      %v1485 = vld [vmem:[%s8] sm:$0xff]
      %v1486 = vld [vmem:[%s8 + $0x8] sm:$0xff]
      %vm1487 = vcmask 130048
      %v1489 = vsel %vm1487, %v1482, 0
      %1491 = vmatprep.subr.mxu0 0.0
      %1492 = vmatpush1.msra.mxu0 0.0
      %1493 = vmatprep.subr.mxu0 0.0
      %1494 = vmatpush1.msra.mxu0 0.0
      %1495 = vmatprep.subr.mxu0 0.0
      %1496 = vmatpush1.msra.mxu0 0.0
      %1497 = vmatprep.subr.mxu0 0.0
      %1498 = vmatpush1.msra.mxu0 0.0
      %1499 = vmatprep.subr.mxu0 0.0
      %1500 = vmatpush1.msra.mxu0 0.0
      %1501 = vmatprep.subr.mxu0 0.0
      %1502 = vmatpush1.msra.mxu0 0.0
      %1503 = vmatprep.subr.mxu0 0.0
      %1504 = vmatpush1.msra.mxu0 0.0
      %1505 = vmatprep.subr.mxu0 0.0
      %1506 = vmatpush1.msra.mxu0 0.0
      %1507 = vmatprep.subr.mxu0 0.0
      %1508 = vmatpush1.msra.mxu0 0.0
      %1509 = vmatprep.subr.mxu0 0.0
      %1510 = vmatpush1.msra.mxu0 0.0
      %1511 = vmatprep.subr.mxu0 0.0
      %1512 = vmatpush1.msra.mxu0 0.0
      %1513 = vmatprep.subr.mxu0 0.0
      %1514 = vmatpush1.msra.mxu0 0.0
      %1515 = vmatprep.subr.mxu0 0.0
      %1516 = vmatpush1.msra.mxu0 0.0
      %1517 = vmatprep.subr.mxu0 0.0
      %1518 = vmatpush1.msra.mxu0 0.0
      %1519 = vmatprep.subr.mxu0 0.0
      %1520 = vmatpush1.msra.mxu0 %v1486
      %1521 = vmatprep.subr.mxu0 0.0
      %1522 = vmatpush1.msra.mxu0 %v1485
      %1523 = vmatprep.subr.mxu0 0.0
      %1524 = vmatpush2.msra.mxu0 0.0
      %1525 = vmatprep.subr.mxu0 0.0
      %1526 = vmatpush2.msra.mxu0 0.0
      %1527 = vmatprep.subr.mxu0 0.0
      %1528 = vmatpush2.msra.mxu0 0.0
      %1529 = vmatprep.subr.mxu0 0.0
      %1530 = vmatpush2.msra.mxu0 0.0
      %1531 = vmatprep.subr.mxu0 0.0
      %1532 = vmatpush2.msra.mxu0 0.0
      %1533 = vmatprep.subr.mxu0 0.0
      %1534 = vmatpush2.msra.mxu0 0.0
      %1535 = vmatprep.subr.mxu0 0.0
      %1536 = vmatpush2.msra.mxu0 0.0
      %1537 = vmatprep.subr.mxu0 0.0
      %1538 = vmatpush2.msra.mxu0 0.0
      %1539 = vmatprep.subr.mxu0 0.0
      %1540 = vmatpush2.msra.mxu0 0.0
      %1541 = vmatprep.subr.mxu0 0.0
      %1542 = vmatpush2.msra.mxu0 0.0
      %1543 = vmatprep.subr.mxu0 0.0
      %1544 = vmatpush2.msra.mxu0 0.0
      %1545 = vmatprep.subr.mxu0 0.0
      %1546 = vmatpush2.msra.mxu0 0.0
      %1547 = vmatprep.subr.mxu0 0.0
      %1548 = vmatpush2.msra.mxu0 0.0
      %1549 = vmatprep.subr.mxu0 0.0
      %1550 = vmatpush2.msra.mxu0 0.0
      %1551 = vmatprep.subr.mxu0 0.0
      %1552 = vmatpush2.msra.mxu0 0.0
      %1553 = vmatprep.subr.mxu0 0.0
      %1554 = vmatpush2.msra.mxu0 0.0
      %1555 = vmatprep.mubr.f32.mxu0 0.0
      %1556 = vmatmul.mubr.f32.gmra.mxu0 %v1489
      %v1557 = vpop.f32.mrf.mxu0
      %v1558 = vadd.f32 0.0, %v1557
      %v1559 = vpop.f32.mrf.mxu0
      %1560 = vdwg.mxu0
      %v1561 = vtanh.pop %v1558
      %v1563 = vsel %vm1487, %v1561, 0
      %v1566 = vsel %vm1487, %v1399, 0
      %v1569 = vsel %vm1487, %v1400, 0
      %v1572 = vsel %vm1487, %v1401, 0
      %v1575 = vsel %vm1487, %v1402, 0
      %v1578 = vsel %vm1487, %v1403, 0
      %v1581 = vsel %vm1487, %v1404, 0
      %v1584 = vsel %vm1487, %v1405, 0
      %v1587 = vsel %vm1487, %v1406, 0
      %v1590 = vsel %vm1487, %v1407, 0
      %v1593 = vsel %vm1487, %v1408, 0
      %v1596 = vsel %vm1487, %v1409, 0
      %v1599 = vsel %vm1487, %v1410, 0
      %v1602 = vsel %vm1487, %v1411, 0
      %v1605 = vsel %vm1487, %v1412, 0
      %v1608 = vsel %vm1487, %v1413, 0
      %v1611 = vsel %vm1487, %v1414, 0
      %1613 = vmatprep.subr.mxu0 0.0
      %1614 = vmatpush1.xpose.msra.mxu0 %v1611
      %1615 = vmatprep.subr.mxu0 0.0
      %1616 = vmatpush1.xpose.msra.mxu0 %v1608
      %1617 = vmatprep.subr.mxu0 0.0
      %1618 = vmatpush1.xpose.msra.mxu0 %v1605
      %1619 = vmatprep.subr.mxu0 0.0
      %1620 = vmatpush1.xpose.msra.mxu0 %v1602
      %1621 = vmatprep.subr.mxu0 0.0
      %1622 = vmatpush1.xpose.msra.mxu0 %v1599
      %1623 = vmatprep.subr.mxu0 0.0
      %1624 = vmatpush1.xpose.msra.mxu0 %v1596
      %1625 = vmatprep.subr.mxu0 0.0
      %1626 = vmatpush1.xpose.msra.mxu0 %v1593
      %1627 = vmatprep.subr.mxu0 0.0
      %1628 = vmatpush1.xpose.msra.mxu0 %v1590
      %1629 = vmatprep.subr.mxu0 0.0
      %1630 = vmatpush1.xpose.msra.mxu0 %v1587
      %1631 = vmatprep.subr.mxu0 0.0
      %1632 = vmatpush1.xpose.msra.mxu0 %v1584
      %1633 = vmatprep.subr.mxu0 0.0
      %1634 = vmatpush1.xpose.msra.mxu0 %v1581
      %1635 = vmatprep.subr.mxu0 0.0
      %1636 = vmatpush1.xpose.msra.mxu0 %v1578
      %1637 = vmatprep.subr.mxu0 0.0
      %1638 = vmatpush1.xpose.msra.mxu0 %v1575
      %1639 = vmatprep.subr.mxu0 0.0
      %1640 = vmatpush1.xpose.msra.mxu0 %v1572
      %1641 = vmatprep.subr.mxu0 0.0
      %1642 = vmatpush1.xpose.msra.mxu0 %v1569
      %1643 = vmatprep.subr.mxu0 0.0
      %1644 = vmatpush1.xpose.msra.mxu0 %v1566
      %1645 = vmatprep.subr.mxu0 0.0
      %1646 = vmatpush2.xpose.msra.mxu0 0.0
      %1647 = vmatprep.subr.mxu0 0.0
      %1648 = vmatpush2.xpose.msra.mxu0 0.0
      %1649 = vmatprep.subr.mxu0 0.0
      %1650 = vmatpush2.xpose.msra.mxu0 0.0
      %1651 = vmatprep.subr.mxu0 0.0
      %1652 = vmatpush2.xpose.msra.mxu0 0.0
      %1653 = vmatprep.subr.mxu0 0.0
      %1654 = vmatpush2.xpose.msra.mxu0 0.0
      %1655 = vmatprep.subr.mxu0 0.0
      %1656 = vmatpush2.xpose.msra.mxu0 0.0
      %1657 = vmatprep.subr.mxu0 0.0
      %1658 = vmatpush2.xpose.msra.mxu0 0.0
      %1659 = vmatprep.subr.mxu0 0.0
      %1660 = vmatpush2.xpose.msra.mxu0 0.0
      %1661 = vmatprep.subr.mxu0 0.0
      %1662 = vmatpush2.xpose.msra.mxu0 0.0
      %1663 = vmatprep.subr.mxu0 0.0
      %1664 = vmatpush2.xpose.msra.mxu0 0.0
      %1665 = vmatprep.subr.mxu0 0.0
      %1666 = vmatpush2.xpose.msra.mxu0 0.0
      %1667 = vmatprep.subr.mxu0 0.0
      %1668 = vmatpush2.xpose.msra.mxu0 0.0
      %1669 = vmatprep.subr.mxu0 0.0
      %1670 = vmatpush2.xpose.msra.mxu0 0.0
      %1671 = vmatprep.subr.mxu0 0.0
      %1672 = vmatpush2.xpose.msra.mxu0 0.0
      %1673 = vmatprep.subr.mxu0 0.0
      %1674 = vmatpush2.xpose.msra.mxu0 0.0
      %1675 = vmatprep.subr.mxu0 0.0
      %1676 = vmatpush2.xpose.msra.mxu0 0.0
      %1677 = vmatprep.mubr.f32.mxu0 0.0
      %1678 = vmatmul.mubr.f32.gmra.mxu0 %v1563
      %v1679 = vpop.f32.mrf.mxu0
      %v1680 = vadd.f32 0.0, %v1679
      %v1681 = vpop.f32.mrf.mxu0
      %1682 = vdwg.mxu0
      %v1683 = vxor.u32 %v1680, 2147483648
      %v1684 = vmul.f32 %v1683, 1.442695
      %v1685 = vpow.pop %v1684
      %v1686 = vadd.f32 %v1685, 1.0
      %v1687 = vrcp.pop %v1686
      %v1688 = vmul.f32 1.0, %v1687
      %1689 = vmatprep.subr.mxu0 0.0
      %1690 = vmatpush1.msra.mxu0 %v1414
      %1691 = vmatprep.subr.mxu0 0.0
      %1692 = vmatpush1.msra.mxu0 %v1413
      %1693 = vmatprep.subr.mxu0 0.0
      %1694 = vmatpush1.msra.mxu0 %v1412
      %1695 = vmatprep.subr.mxu0 0.0
      %1696 = vmatpush1.msra.mxu0 %v1411
      %1697 = vmatprep.subr.mxu0 0.0
      %1698 = vmatpush1.msra.mxu0 %v1410
      %1699 = vmatprep.subr.mxu0 0.0
      %1700 = vmatpush1.msra.mxu0 %v1409
      %1701 = vmatprep.subr.mxu0 0.0
      %1702 = vmatpush1.msra.mxu0 %v1408
      %1703 = vmatprep.subr.mxu0 0.0
      %1704 = vmatpush1.msra.mxu0 %v1407
      %1705 = vmatprep.subr.mxu0 0.0
      %1706 = vmatpush1.msra.mxu0 %v1406
      %1707 = vmatprep.subr.mxu0 0.0
      %1708 = vmatpush1.msra.mxu0 %v1405
      %1709 = vmatprep.subr.mxu0 0.0
      %1710 = vmatpush1.msra.mxu0 %v1404
      %1711 = vmatprep.subr.mxu0 0.0
      %1712 = vmatpush1.msra.mxu0 %v1403
      %1713 = vmatprep.subr.mxu0 0.0
      %1714 = vmatpush1.msra.mxu0 %v1402
      %1715 = vmatprep.subr.mxu0 0.0
      %1716 = vmatpush1.msra.mxu0 %v1401
      %1717 = vmatprep.subr.mxu0 0.0
      %1718 = vmatpush1.msra.mxu0 %v1400
      %1719 = vmatprep.subr.mxu0 0.0
      %1720 = vmatpush1.msra.mxu0 %v1399
      %1721 = vmatprep.subr.mxu0 0.0
      %1722 = vmatpush2.msra.mxu0 0.0
      %1723 = vmatprep.subr.mxu0 0.0
      %1724 = vmatpush2.msra.mxu0 0.0
      %1725 = vmatprep.subr.mxu0 0.0
      %1726 = vmatpush2.msra.mxu0 0.0
      %1727 = vmatprep.subr.mxu0 0.0
      %1728 = vmatpush2.msra.mxu0 0.0
      %1729 = vmatprep.subr.mxu0 0.0
      %1730 = vmatpush2.msra.mxu0 0.0
      %1731 = vmatprep.subr.mxu0 0.0
      %1732 = vmatpush2.msra.mxu0 0.0
      %1733 = vmatprep.subr.mxu0 0.0
      %1734 = vmatpush2.msra.mxu0 0.0
      %1735 = vmatprep.subr.mxu0 0.0
      %1736 = vmatpush2.msra.mxu0 0.0
      %1737 = vmatprep.subr.mxu0 0.0
      %1738 = vmatpush2.msra.mxu0 0.0
      %1739 = vmatprep.subr.mxu0 0.0
      %1740 = vmatpush2.msra.mxu0 0.0
      %1741 = vmatprep.subr.mxu0 0.0
      %1742 = vmatpush2.msra.mxu0 0.0
      %1743 = vmatprep.subr.mxu0 0.0
      %1744 = vmatpush2.msra.mxu0 0.0
      %1745 = vmatprep.subr.mxu0 0.0
      %1746 = vmatpush2.msra.mxu0 0.0
      %1747 = vmatprep.subr.mxu0 0.0
      %1748 = vmatpush2.msra.mxu0 0.0
      %1749 = vmatprep.subr.mxu0 0.0
      %1750 = vmatpush2.msra.mxu0 0.0
      %1751 = vmatprep.subr.mxu0 0.0
      %1752 = vmatpush2.msra.mxu0 0.0
      %1753 = vmatprep.mubr.f32.mxu0 0.0
      %1754 = vmatmul.mubr.f32.gmra.mxu0 %v1688
      %v1755 = vpop.f32.mrf.mxu0
      %v1756 = vadd.f32 0.0, %v1755
      %v1757 = vpop.f32.mrf.mxu0
      %1758 = vdwg.mxu0
      %v1759 = vld [vmem:[%s9] sm:$0xff]
      %v1760 = vld [vmem:[%s9 + $0x8] sm:$0xff]
      %v1761 = vld [vmem:[%s10] sm:$0x1]
      %v1763 = vsel %vm1487, %v1756, 0
      %1765 = vmatprep.subr.mxu0 0.0
      %1766 = vmatpush1.msra.mxu0 0.0
      %1767 = vmatprep.subr.mxu0 0.0
      %1768 = vmatpush1.msra.mxu0 0.0
      %1769 = vmatprep.subr.mxu0 0.0
      %1770 = vmatpush1.msra.mxu0 0.0
      %1771 = vmatprep.subr.mxu0 0.0
      %1772 = vmatpush1.msra.mxu0 0.0
      %1773 = vmatprep.subr.mxu0 0.0
      %1774 = vmatpush1.msra.mxu0 0.0
      %1775 = vmatprep.subr.mxu0 0.0
      %1776 = vmatpush1.msra.mxu0 0.0
      %1777 = vmatprep.subr.mxu0 0.0
      %1778 = vmatpush1.msra.mxu0 0.0
      %1779 = vmatprep.subr.mxu0 0.0
      %1780 = vmatpush1.msra.mxu0 0.0
      %1781 = vmatprep.subr.mxu0 0.0
      %1782 = vmatpush1.msra.mxu0 0.0
      %1783 = vmatprep.subr.mxu0 0.0
      %1784 = vmatpush1.msra.mxu0 0.0
      %1785 = vmatprep.subr.mxu0 0.0
      %1786 = vmatpush1.msra.mxu0 0.0
      %1787 = vmatprep.subr.mxu0 0.0
      %1788 = vmatpush1.msra.mxu0 0.0
      %1789 = vmatprep.subr.mxu0 0.0
      %1790 = vmatpush1.msra.mxu0 0.0
      %1791 = vmatprep.subr.mxu0 0.0
      %1792 = vmatpush1.msra.mxu0 0.0
      %1793 = vmatprep.subr.mxu0 0.0
      %1794 = vmatpush1.msra.mxu0 %v1760
      %1795 = vmatprep.subr.mxu0 0.0
      %1796 = vmatpush1.msra.mxu0 %v1759
      %1797 = vmatprep.subr.mxu0 0.0
      %1798 = vmatpush2.msra.mxu0 0.0
      %1799 = vmatprep.subr.mxu0 0.0
      %1800 = vmatpush2.msra.mxu0 0.0
      %1801 = vmatprep.subr.mxu0 0.0
      %1802 = vmatpush2.msra.mxu0 0.0
      %1803 = vmatprep.subr.mxu0 0.0
      %1804 = vmatpush2.msra.mxu0 0.0
      %1805 = vmatprep.subr.mxu0 0.0
      %1806 = vmatpush2.msra.mxu0 0.0
      %1807 = vmatprep.subr.mxu0 0.0
      %1808 = vmatpush2.msra.mxu0 0.0
      %1809 = vmatprep.subr.mxu0 0.0
      %1810 = vmatpush2.msra.mxu0 0.0
      %1811 = vmatprep.subr.mxu0 0.0
      %1812 = vmatpush2.msra.mxu0 0.0
      %1813 = vmatprep.subr.mxu0 0.0
      %1814 = vmatpush2.msra.mxu0 0.0
      %1815 = vmatprep.subr.mxu0 0.0
      %1816 = vmatpush2.msra.mxu0 0.0
      %1817 = vmatprep.subr.mxu0 0.0
      %1818 = vmatpush2.msra.mxu0 0.0
      %1819 = vmatprep.subr.mxu0 0.0
      %1820 = vmatpush2.msra.mxu0 0.0
      %1821 = vmatprep.subr.mxu0 0.0
      %1822 = vmatpush2.msra.mxu0 0.0
      %1823 = vmatprep.subr.mxu0 0.0
      %1824 = vmatpush2.msra.mxu0 0.0
      %1825 = vmatprep.subr.mxu0 0.0
      %1826 = vmatpush2.msra.mxu0 0.0
      %1827 = vmatprep.subr.mxu0 0.0
      %1828 = vmatpush2.msra.mxu0 0.0
      %1829 = vmatprep.mubr.f32.mxu0 0.0
      %1830 = vmatmul.mubr.f32.gmra.mxu0 %v1763
      %v1831 = vpop.f32.mrf.mxu0
      %v1832 = vadd.f32 %v1761, %v1831
      %v1833 = vpop.f32.mrf.mxu0
      %1834 = vdwg.mxu0
      %v1835 = vmax.f32 %v1832, 0.0
      %v1836 = vld [vmem:[%s11] sm:$0xff]
      %v1837 = vld [vmem:[%s12] sm:$0x1]
      %vm1838 = vcmask 64512
      %v1840 = vsel %vm1838, %v1835, 0
      %1842 = vmatprep.subr.mxu0 0.0
      %1843 = vmatpush1.msra.mxu0 0.0
      %1844 = vmatprep.subr.mxu0 0.0
      %1845 = vmatpush1.msra.mxu0 0.0
      %1846 = vmatprep.subr.mxu0 0.0
      %1847 = vmatpush1.msra.mxu0 0.0
      %1848 = vmatprep.subr.mxu0 0.0
      %1849 = vmatpush1.msra.mxu0 0.0
      %1850 = vmatprep.subr.mxu0 0.0
      %1851 = vmatpush1.msra.mxu0 0.0
      %1852 = vmatprep.subr.mxu0 0.0
      %1853 = vmatpush1.msra.mxu0 0.0
      %1854 = vmatprep.subr.mxu0 0.0
      %1855 = vmatpush1.msra.mxu0 0.0
      %1856 = vmatprep.subr.mxu0 0.0
      %1857 = vmatpush1.msra.mxu0 0.0
      %1858 = vmatprep.subr.mxu0 0.0
      %1859 = vmatpush1.msra.mxu0 0.0
      %1860 = vmatprep.subr.mxu0 0.0
      %1861 = vmatpush1.msra.mxu0 0.0
      %1862 = vmatprep.subr.mxu0 0.0
      %1863 = vmatpush1.msra.mxu0 0.0
      %1864 = vmatprep.subr.mxu0 0.0
      %1865 = vmatpush1.msra.mxu0 0.0
      %1866 = vmatprep.subr.mxu0 0.0
      %1867 = vmatpush1.msra.mxu0 0.0
      %1868 = vmatprep.subr.mxu0 0.0
      %1869 = vmatpush1.msra.mxu0 0.0
      %1870 = vmatprep.subr.mxu0 0.0
      %1871 = vmatpush1.msra.mxu0 0.0
      %1872 = vmatprep.subr.mxu0 0.0
      %1873 = vmatpush1.msra.mxu0 %v1836
      %1874 = vmatprep.subr.mxu0 0.0
      %1875 = vmatpush2.msra.mxu0 0.0
      %1876 = vmatprep.subr.mxu0 0.0
      %1877 = vmatpush2.msra.mxu0 0.0
      %1878 = vmatprep.subr.mxu0 0.0
      %1879 = vmatpush2.msra.mxu0 0.0
      %1880 = vmatprep.subr.mxu0 0.0
      %1881 = vmatpush2.msra.mxu0 0.0
      %1882 = vmatprep.subr.mxu0 0.0
      %1883 = vmatpush2.msra.mxu0 0.0
      %1884 = vmatprep.subr.mxu0 0.0
      %1885 = vmatpush2.msra.mxu0 0.0
      %1886 = vmatprep.subr.mxu0 0.0
      %1887 = vmatpush2.msra.mxu0 0.0
      %1888 = vmatprep.subr.mxu0 0.0
      %1889 = vmatpush2.msra.mxu0 0.0
      %1890 = vmatprep.subr.mxu0 0.0
      %1891 = vmatpush2.msra.mxu0 0.0
      %1892 = vmatprep.subr.mxu0 0.0
      %1893 = vmatpush2.msra.mxu0 0.0
      %1894 = vmatprep.subr.mxu0 0.0
      %1895 = vmatpush2.msra.mxu0 0.0
      %1896 = vmatprep.subr.mxu0 0.0
      %1897 = vmatpush2.msra.mxu0 0.0
      %1898 = vmatprep.subr.mxu0 0.0
      %1899 = vmatpush2.msra.mxu0 0.0
      %1900 = vmatprep.subr.mxu0 0.0
      %1901 = vmatpush2.msra.mxu0 0.0
      %1902 = vmatprep.subr.mxu0 0.0
      %1903 = vmatpush2.msra.mxu0 0.0
      %1904 = vmatprep.subr.mxu0 0.0
      %1905 = vmatpush2.msra.mxu0 0.0
      %1906 = vmatprep.mubr.f32.mxu0 0.0
      %1907 = vmatmul.mubr.f32.gmra.mxu0 %v1840
      %v1908 = vpop.f32.mrf.mxu0
      %v1909 = vadd.f32 %v1837, %v1908
      %v1910 = vpop.f32.mrf.mxu0
      %1911 = vdwg.mxu0
      %vm1912 = vcmask 24576
      %v1913 = vsel %vm1912, %v1909, -inf
      %1914 = vmax.xlane.f32.xlu0 %v1913
      %v1915 = vpop.xlane.xlu0 %1914
      %v1916 = vsub.f32 %v1909, %v1915
      %v1917 = vmul.f32 %v1916, 1.442695
      %v1918 = vpow.pop %v1917
      %v1919 = vsel %vm1912, %v1918, 0.0
      %1920 = vadd.xlane.f32.xlu0 %v1919
      %v1921 = vpop.xlane.xlu0 %1920
      %v1922 = vlog2.pop %v1921
      %v1923 = vmul.f32 %v1922, 0.6931472
      %v1924 = vsub.f32 %v1916, %v1923
      %1925 = vst.msk [vmem:[%s456] sm:$0x1] %vm1912, %v1924
      %p1926 = scmp.lt.s32.totalorder %s24, 7
      %s1927 = scalar_select %p1926, %s24, 7
      %s1928 = scalar_lea.vmem %s13, %s1927
      // Predicated region
      $region73: #{gcn_forward.1} parent=71 // pred_check
        %p1929 = pneg %p325
      $region74: #{gcn_forward.1} parent=71 // pred_check_branch
        %1931 = sbr.rel (%p1929) target = $region76
      $region75: #{gcn_forward.1} parent=71 // pred_region
        _
      $region76: #{gcn_forward.1} parent=71 // pred_fallthru
        _
    $region72: #{gcn_forward.1} parent=5 // pred_fallthru
      _
    %p1932 = scmp.le.s32.totalorder 2, %s19
    // Predicated region
    $region77: #{gcn_forward.1} parent=5 // pred_check
      %p1933 = pneg %p1932
    $region78: #{gcn_forward.1} parent=5 // pred_check_branch
      %1935 = sbr.rel (%p1933) target = $region80
    $region79: #{gcn_forward.1} parent=5 // pred_region
      %s1936 = ssub.s32 %s19, 2
      // Predicated region
      $region81: #{gcn_forward.1} parent=79 // pred_check
        %p1937 = pneg %p331
      $region82: #{gcn_forward.1} parent=79 // pred_check_branch
        %1939 = sbr.rel (%p1937) target = $region84
      $region83: #{gcn_forward.1} parent=79 // pred_region
        %p1940 = scmp.lt.s32.totalorder %s25, 7
        %s1941 = scalar_select %p1940, %s25, 7
        %s1942 = scalar_lea.vmem %s13, %s1941
      $region84: #{gcn_forward.1} parent=79 // pred_fallthru
        _
    $region80: #{gcn_forward.1} parent=5 // pred_fallthru
      _
  $region6: #{gcn_forward.1} parent=0 // loop_footer
    %s23 = sadd.s32 1, %s19
  $region7: #{gcn_forward.1} parent=0 // loop_footer_branch
    %18 = sbr.rel target = $region3
  $region8: #{gcn_forward.1} parent=0 // loop_exit
    _

</llo_original>
